<compile_context>
chip_gen: v7x
topology: tpu7x:2x2x1
jax: 0.10.0
libtpu: 0.0.40
codegen_flags: <defaults>
</compile_context>

<pallas_src>
import functools
import math

import jax
import jax.numpy as jnp
from jax.experimental import pallas as pl
from jax.experimental.pallas import tpu as pltpu

HM_WEIGHT = 1.0
WH_WEIGHT = 0.1
OFF_WEIGHT = 1.0
NUM_STACKS = 1

_LOG_LO = math.log(1e-4)
_LOG_HI = math.log(1.0 - 1e-4)


def _clamped_log_probs(x):
    """log(p), log(1-p) for p = clip(sigmoid(x), 1e-4, 1-1e-4) (CenterNet _sigmoid).

    Log-domain softplus formulation: one exp + one log on the EUP instead of
    sigmoid + two separate logs; the clamp is applied in the log domain (monotonic,
    hence equivalent to clamping p).
    """
    sp = jnp.maximum(x, 0.0) + jnp.log(1.0 + jnp.exp(-jnp.abs(x)))   # softplus(x)
    log_p = jnp.clip(x - sp, _LOG_LO, _LOG_HI)
    log_1mp = jnp.clip(-sp, _LOG_LO, _LOG_HI)
    return log_p, log_1mp


def _ctdet_hm_kernel(cls_ref, bounds_ref, coords_ref, pred_ref, gt_ref, out_ref,
                     nsum_scr, gt8_scr, pred8_scr, *, num_out, num_cls):
    # Ref shapes (B squeezed):
    #   cls_ref    SMEM (B, KP) int32          bounds_ref (KP, 8) f32
    #   coords_ref (2, HW) f32                 pred_ref   (NO*C, HW) f32 logits
    #   gt_ref     (C, HW) f32                 out_ref    (KP, NOP) f32
    #   nsum_scr (NO, HW)   gt8_scr (8, HW)    pred8_scr (NO*8, HW)
    NO, C = num_out, num_cls
    KP = out_ref.shape[0]
    i = pl.program_id(0)

    # ---- per-image prologue (once per grid step == once per image): per-candidate
    # sum over classes of log(1-p)*p^2, reused by every object of this image.
    # TODO(synk): at production C (~80) chunk the class axis here to bound live
    # values / spills; the toy C fits in a couple of vregs.
    for o in range(NO):
        x = pred_ref[o * C:(o + 1) * C, :]                       # (C, HW)
        log_p, log_1mp = _clamped_log_probs(x)
        neg_map = log_1mp * jnp.exp(2.0 * log_p)                 # log(1-p) * p^2
        nsum_scr[o:o + 1, :] = jnp.sum(neg_map, axis=0, keepdims=True)

    out_ref[...] = jnp.zeros_like(out_ref)

    ys = coords_ref[0:1, :]                                      # (1, HW)
    xs = coords_ref[1:2, :]

    # ---- objects, 8 per tile across sublanes.  KP is static so these Python loops
    # trace to fully unrolled code (equivalent to lax.fori_loop(unroll=True)).
    for t in range(KP // 8):
        k0 = t * 8

        # Gather the 8 objects' class channels: gt + each candidate's logits.
        for kk in range(8):
            c = cls_ref[i, k0 + kk]
            gt8_scr[kk:kk + 1, :] = gt_ref[pl.ds(c, 1), :]
            for o in range(NO):
                pred8_scr[o * 8 + kk:o * 8 + kk + 1, :] = \
                    pred_ref[pl.ds(o * C + c, 1), :]

        # Crop-region mask per object: (8,1) bounds vs (1,HW) coords -> (8,HW).
        # Reproduces the reference [:, :, y0:y1, x0:x1] crop.
        y0 = bounds_ref[k0:k0 + 8, 0:1]
        y1 = bounds_ref[k0:k0 + 8, 1:2]
        x0 = bounds_ref[k0:k0 + 8, 2:3]
        x1 = bounds_ref[k0:k0 + 8, 3:4]
        region = ((ys >= y0) & (ys < y1) &
                  (xs >= x0) & (xs < x1)).astype(jnp.float32)     # (8, HW)

        gt8 = gt8_scr[...]                                        # (8, HW)
        pos_m = (gt8 == 1.0).astype(jnp.float32) * region
        neg_m = (gt8 < 1.0).astype(jnp.float32) * region
        neg_w = (1.0 - gt8) ** 4
        num_pos = jnp.sum(pos_m, axis=-1, keepdims=True)          # (8, 1)

        for o in range(NO):
            x8 = pred8_scr[o * 8:(o + 1) * 8, :]                  # (8, HW)
            log_p, log_1mp = _clamped_log_probs(x8)
            p2 = jnp.exp(2.0 * log_p)
            q2 = jnp.exp(2.0 * log_1mp)                           # (1-p)^2
            pos_c = log_p * q2
            neg_c = log_1mp * p2
            nsum = nsum_scr[o:o + 1, :]                           # (1, HW) -> bcast 8

            pos_s = jnp.sum(pos_c * pos_m, axis=-1, keepdims=True)
            # Class channel: (1-gt)^4-weighted negatives.  Every other class has
            # gt == 0 inside the crop (the reference multiplies by hm_mask), i.e.
            # weight 1 -> contribute via region * (nsum - neg_c).
            neg_s = jnp.sum(neg_c * (neg_w * neg_m) + region * (nsum - neg_c),
                            axis=-1, keepdims=True)
            hm = jnp.where(num_pos == 0.0, -neg_s,
                           -(pos_s + neg_s) / jnp.maximum(num_pos, 1.0))
            out_ref[k0:k0 + 8, o:o + 1] = hm * (1.0 / NUM_STACKS)


def _pick_vmem_limit(resident_bytes):
    """Scoped-VMEM limit clamped to the current generation's per-core capacity
    (64 MiB v7x, 128 MiB v5e/v6e) minus headroom.  Always set explicitly so
    footprints >16 MiB don't trip v5e's 16 MiB default scoped limit."""
    try:
        cap = int(pltpu.get_tpu_info().vmem_capacity_bytes)
    except Exception:
        cap = 64 * 1024 * 1024      # assume the smallest generation (v7x) if unknown
    headroom = 8 * 1024 * 1024
    want = max(32 * 1024 * 1024, resident_bytes + (8 << 20))
    return int(min(want, cap - headroom))


def ctdet_loss(all_outputs, batch):
    # Dense heads (NCHW, matching PyTorch), candidates stacked next to the batch dim.
    pred_hm = jnp.stack([o['hm'] for o in all_outputs], axis=1)    # (B, NO, C, H, W)
    pred_wh = jnp.stack([o['wh'] for o in all_outputs], axis=0)    # (NO, B, 2, H, W)
    pred_reg = jnp.stack([o['reg'] for o in all_outputs], axis=0)  # (NO, B, 2, H, W)
    gt_hm = batch['hm']                                            # (B, C, H, W)

    B, NO, C, H, W = pred_hm.shape
    HW = H * W
    K = batch['wh'].shape[1]
    KP = ((K + 7) // 8) * 8             # objects padded to a multiple of 8 (sublanes)
    BF = 8                              # bounds fields (y0, y1, x0, x1, pad...)
    NOP = ((NO + 127) // 128) * 128     # candidates padded to lane width

    wh_t = batch['wh'].astype(jnp.float32)
    reg_t = batch['reg'].astype(jnp.float32)
    ori_wh = batch['ori_wh']
    reg_mask = batch['reg_mask'].astype(jnp.float32)
    cls_idx = batch['cls_idx'].astype(jnp.int32)
    ind = batch['ind'].astype(jnp.int32)
    cxcy = batch['cxcy']

    cx = cxcy[..., 0].astype(jnp.int32)
    cy = cxcy[..., 1].astype(jnp.int32)
    w = wh_t[..., 0].astype(jnp.int32)
    h = wh_t[..., 1].astype(jnp.int32)
    ow = ori_wh[..., 0].astype(jnp.int32)
    oh = ori_wh[..., 1].astype(jnp.int32)

    y0 = jnp.maximum(1, (cy - h // 2) - 1)
    y1 = jnp.minimum(H - 1, (cy + h // 2) + 1)
    x0 = jnp.maximum(1, (cx - w // 2) - 1)
    x1 = jnp.minimum(W - 1, (cx + w // 2) + 1)

    # Computed as in the reference but unused by the standard focal loss (see TODO).
    pixel_num = w * h
    ori_ar = ow.astype(jnp.float32) / jnp.maximum(oh.astype(jnp.float32), 1.0)
    ar = w.astype(jnp.float32) / jnp.maximum(h.astype(jnp.float32), 1.0)
    badly_cropped = jnp.logical_not(
        (0.5 * ori_ar < ar) & (ar < 2.0 * ori_ar)).astype(jnp.float32)
    del pixel_num, badly_cropped  # TODO(synk): wire into custom FocalLoss if provided

    # Per-object crop bounds in VMEM (objects on sublanes); padded slots are all-zero
    # => empty region => hm loss 0 (masked out in the glue anyway).
    bounds = jnp.stack([y0, y1, x0, x1], axis=-1).astype(jnp.float32)   # (B, K, 4)
    bounds = jnp.pad(bounds, ((0, 0), (0, KP - K), (0, BF - 4)))        # (B, KP, BF)
    # Class indices in SMEM for dynamic channel slicing (padded slots -> class 0).
    cls_pad = jnp.pad(cls_idx, ((0, 0), (0, KP - K)))                   # (B, KP)

    # Flattened-spatial coordinate table (2, HW): row 0 = y, row 1 = x (lane-dense).
    ys_flat = jnp.repeat(jnp.arange(H, dtype=jnp.float32), W)
    xs_flat = jnp.tile(jnp.arange(W, dtype=jnp.float32), H)
    coords = jnp.stack([ys_flat, xs_flat], axis=0)                      # (2, HW)

    # Lane-dense flattened heatmaps; candidate/class folded so the kernel only needs
    # 2-D ref indexing (row o*C + c).
    pred_hm_f = pred_hm.reshape(B, NO * C, HW).astype(jnp.float32)
    gt_hm_f = gt_hm.reshape(B, C, HW).astype(jnp.float32)

    # Resident-VMEM estimate: double-buffered in/out blocks + persistent scratch.
    # TODO(synk): at production scale on v7x (64 MiB) consider pipeline_mode=
    # pl.Buffered(1) for the big per-image pred/gt blocks (they only change once per
    # image, so double-buffering buys little) and bf16 heatmap loads for v5e.
    blk_in_bytes = 4 * (NO * C * HW + C * HW + KP * BF + 2 * HW)
    blk_out_bytes = 4 * KP * NOP
    scratch_bytes = 4 * (NO * HW + 8 * HW + NO * 8 * HW)
    resident_bytes = 2 * (blk_in_bytes + blk_out_bytes) + scratch_bytes
    vmem_limit = _pick_vmem_limit(resident_bytes)

    kernel = functools.partial(_ctdet_hm_kernel, num_out=NO, num_cls=C)
    out = pl.pallas_call(
        kernel,
        out_shape=jax.ShapeDtypeStruct((B, KP, NOP), jnp.float32),
        grid=(B,),
        in_specs=[
            pl.BlockSpec(memory_space=pltpu.MemorySpace.SMEM),            # cls
            pl.BlockSpec((None, KP, BF), lambda i: (i, 0, 0)),            # bounds
            pl.BlockSpec((2, HW), lambda i: (0, 0)),                      # coords
            pl.BlockSpec((None, NO * C, HW), lambda i: (i, 0, 0)),        # pred hm
            pl.BlockSpec((None, C, HW), lambda i: (i, 0, 0)),             # gt hm
        ],
        out_specs=pl.BlockSpec((None, KP, NOP), lambda i: (i, 0, 0)),
        scratch_shapes=[pltpu.VMEM((NO, HW), jnp.float32),       # per-candidate nsum
                        pltpu.VMEM((8, HW), jnp.float32),        # gt class rows
                        pltpu.VMEM((NO * 8, HW), jnp.float32)],  # pred class rows
        compiler_params=pltpu.CompilerParams(
            dimension_semantics=("parallel",),     # keep both v7x TCs fed when B >= 2
            vmem_limit_bytes=vmem_limit),
    )(cls_pad, bounds, coords, pred_hm_f, gt_hm_f)

    hm_l = out[:, :K, :NO]                                         # (B, K, NO)

    # ---- per-object wh / offset RegL1 (a K-point gather + scalar math) in JAX ----
    def gather_at_ind(feat):                                       # (NO,B,2,H,W)
        f = jnp.transpose(feat.reshape(NO, B, 2, HW), (0, 1, 3, 2))  # (NO,B,HW,2)
        idx = jnp.broadcast_to(ind[None, :, :, None], (NO, B, K, 2))
        return jnp.take_along_axis(f, idx, axis=2)                 # (NO,B,K,2)

    pwh = gather_at_ind(pred_wh)
    prg = gather_at_ind(pred_reg)
    m = reg_mask[None]                                             # (1, B, K)
    wh_l = ((jnp.abs(pwh[..., 0] * m - wh_t[None, ..., 0] * m)
             + jnp.abs(pwh[..., 1] * m - wh_t[None, ..., 1] * m))
            / (2.0 * m + 1e-4)) / NUM_STACKS                       # (NO, B, K)
    off_l = ((jnp.abs(prg[..., 0] * m - reg_t[None, ..., 0] * m)
              + jnp.abs(prg[..., 1] * m - reg_t[None, ..., 1] * m))
             / (2.0 * m + 1e-4)) / NUM_STACKS
    wh_l = jnp.transpose(wh_l, (1, 2, 0))                          # (B, K, NO)
    off_l = jnp.transpose(off_l, (1, 2, 0))

    weighted = HM_WEIGHT * hm_l + WH_WEIGHT * wh_l + OFF_WEIGHT * off_l

    # min over candidate outputs per object (first index on ties, like list.index(min))
    min_idx = jnp.argmin(weighted, axis=-1)
    min_loss = jnp.min(weighted, axis=-1)
    hm_sel = jnp.take_along_axis(hm_l, min_idx[..., None], axis=-1)[..., 0]
    wh_sel = jnp.take_along_axis(wh_l, min_idx[..., None], axis=-1)[..., 0]
    off_sel = jnp.take_along_axis(off_l, min_idx[..., None], axis=-1)[..., 0]

    # objects looped over in the reference: obj_idx < real_obj_num and w*h > 0
    real_obj_num = jnp.sum((batch['reg_mask'] == 1).astype(jnp.int32), axis=1)
    k_ids = jnp.arange(K)[None, :]
    valid = ((k_ids < real_obj_num[:, None]) & (w * h > 0)).astype(jnp.float32)

    batch_size = batch['input'].shape[0]
    final_loss = jnp.sum(min_loss * valid) / batch_size
    final_hm = jnp.sum(hm_sel * valid) / batch_size
    final_wh = jnp.sum(wh_sel * valid) / batch_size
    final_off = jnp.sum(off_sel * valid) / batch_size
    loss_stats = {'loss': final_loss, 'hm_loss': final_hm,
                  'wh_loss': final_wh, 'off_loss': final_off}
    return final_loss, loss_stats


if __name__ == "__main__":
    key = jax.random.PRNGKey(0)
    B, C, H, W, K, NO = 2, 4, 16, 16, 8, 2
    n_obj = jnp.array([3, 2])                     # real objects per image

    keys = jax.random.split(key, 16)
    cx = jax.random.randint(keys[0], (B, K), 4, 12)
    cy = jax.random.randint(keys[1], (B, K), 4, 12)
    w = jax.random.randint(keys[2], (B, K), 2, 7)
    h = jax.random.randint(keys[3], (B, K), 2, 7)
    cls = jax.random.randint(keys[4], (B, K), 0, C)
    reg = jax.random.uniform(keys[5], (B, K, 2))
    reg_mask = (jnp.arange(K)[None, :] < n_obj[:, None]).astype(jnp.float32)
    ind = cy * W + cx
    cxcy = jnp.stack([cx, cy], axis=-1).astype(jnp.float32)
    wh = jnp.stack([w, h], axis=-1).astype(jnp.float32)
    ori_wh = wh * 4.0

    # ground-truth heatmap with exact 1.0 peaks at object centres
    gt_hm = 0.3 * jax.random.uniform(keys[6], (B, C, H, W))
    b_ids = jnp.repeat(jnp.arange(B), K)
    gt_hm = gt_hm.at[b_ids, cls.reshape(-1), cy.reshape(-1), cx.reshape(-1)].set(1.0)

    batch = {
        'input': jax.random.normal(keys[7], (B, 3, 4 * H, 4 * W), jnp.float32),
        'hm': gt_hm.astype(jnp.float32),
        'wh': wh,
        'reg': reg.astype(jnp.float32),
        'ind': ind,
        'reg_mask': reg_mask,
        'cxcy': cxcy,
        'ori_wh': ori_wh,
        'cls_idx': cls.astype(jnp.float32),
    }

    all_outputs = []
    for o in range(NO):
        all_outputs.append({
            'hm': jax.random.normal(keys[8 + o], (B, C, H, W), jnp.float32),
            'wh': 4.0 * jax.random.uniform(keys[10 + o], (B, 2, H, W), jnp.float32),
            'reg': jax.random.uniform(keys[12 + o], (B, 2, H, W), jnp.float32),
        })

    loss, stats = ctdet_loss(all_outputs, batch)
    loss = jax.block_until_ready(loss)
    stats = jax.block_until_ready(stats)
    assert bool(jnp.isfinite(loss)), "loss is not finite"
    print("KERNEL_OK")
</pallas_src>

<mosaic_0001>
module attributes {stable_mosaic.version = 11 : i64} {
  func.func @_ctdet_hm_kernel(%arg0: i32, %arg1: memref<2x8xi32, #tpu.memory_space<smem>>, %arg2: memref<1x8x8xf32, #tpu.memory_space<vmem>>, %arg3: memref<2x256xf32, #tpu.memory_space<vmem>>, %arg4: memref<1x8x256xf32, #tpu.memory_space<vmem>>, %arg5: memref<1x4x256xf32, #tpu.memory_space<vmem>>, %arg6: memref<1x8x128xf32, #tpu.memory_space<vmem>>, %arg7: memref<2x256xf32, #tpu.memory_space<vmem>>, %arg8: memref<8x256xf32, #tpu.memory_space<vmem>>, %arg9: memref<16x256xf32, #tpu.memory_space<vmem>>) attributes {dimension_semantics = [#tpu.dimension_semantics<parallel>], iteration_bounds = array<i64: 2>, scalar_prefetch = 0 : i64, scratch_operands = 3 : i64, tpu.core_type = #tpu.core_type<tc>, window_params = [{transform_indices = @transform_0, window_bounds = array<i64: 2, 8>}, {transform_indices = @transform_1, window_bounds = array<i64: 1, 8, 8>}, {pipeline_mode = #tpu.pipeline_mode<synchronous>, transform_indices = @transform_2, window_bounds = array<i64: 2, 256>}, {transform_indices = @transform_3, window_bounds = array<i64: 1, 8, 256>}, {transform_indices = @transform_4, window_bounds = array<i64: 1, 4, 256>}, {transform_indices = @transform_5, window_bounds = array<i64: 1, 8, 128>}]} {
    %c0 = arith.constant 0 : index
    %c0_0 = arith.constant 0 : index
    %c0_1 = arith.constant 0 : index
    %0 = vector.load %arg4[%c0, %c0_0, %c0_1] : memref<1x8x256xf32, #tpu.memory_space<vmem>>, vector<1x4x256xf32>
    %1 = vector.shape_cast %0 : vector<1x4x256xf32> to vector<4x256xf32>
    %cst = arith.constant 0.000000e+00 : f32
    %2 = vector.broadcast %cst : f32 to vector<4x256xf32>
    %3 = arith.maximumf %1, %2 : vector<4x256xf32>
    %4 = math.absf %1 : vector<4x256xf32>
    %cst_2 = arith.constant 0.000000e+00 : f32
    %5 = vector.broadcast %cst_2 : f32 to vector<4x256xf32>
    %6 = arith.subf %5, %4 : vector<4x256xf32>
    %7 = math.exp %6 : vector<4x256xf32>
    %cst_3 = arith.constant 1.000000e+00 : f32
    %8 = vector.broadcast %cst_3 : f32 to vector<4x256xf32>
    %9 = arith.addf %8, %7 : vector<4x256xf32>
    %10 = math.log %9 : vector<4x256xf32>
    %11 = arith.addf %3, %10 : vector<4x256xf32>
    %12 = arith.subf %1, %11 : vector<4x256xf32>
    %cst_4 = arith.constant -9.21034049 : f32
    %cst_5 = arith.constant -1.000050e-04 : f32
    %13 = vector.broadcast %cst_4 : f32 to vector<4x256xf32>
    %14 = arith.maximumf %13, %12 : vector<4x256xf32>
    %15 = vector.broadcast %cst_5 : f32 to vector<4x256xf32>
    %16 = arith.minimumf %15, %14 : vector<4x256xf32>
    %cst_6 = arith.constant 0.000000e+00 : f32
    %17 = vector.broadcast %cst_6 : f32 to vector<4x256xf32>
    %18 = arith.subf %17, %11 : vector<4x256xf32>
    %cst_7 = arith.constant -9.21034049 : f32
    %cst_8 = arith.constant -1.000050e-04 : f32
    %19 = vector.broadcast %cst_7 : f32 to vector<4x256xf32>
    %20 = arith.maximumf %19, %18 : vector<4x256xf32>
    %21 = vector.broadcast %cst_8 : f32 to vector<4x256xf32>
    %22 = arith.minimumf %21, %20 : vector<4x256xf32>
    %cst_9 = arith.constant 2.000000e+00 : f32
    %23 = vector.broadcast %cst_9 : f32 to vector<4x256xf32>
    %24 = arith.mulf %23, %16 : vector<4x256xf32>
    %25 = math.exp %24 : vector<4x256xf32>
    %26 = arith.mulf %22, %25 : vector<4x256xf32>
    %cst_10 = arith.constant dense<0.000000e+00> : vector<256xf32>
    %27 = vector.multi_reduction <add>, %26, %cst_10 [0] : vector<4x256xf32> to vector<256xf32>
    %28 = vector.shape_cast %27 : vector<256xf32> to vector<1x256xf32>
    %c0_11 = arith.constant 0 : index
    %c0_12 = arith.constant 0 : index
    %29 = vector.load %arg7[%c0_11, %c0_12] : memref<2x256xf32, #tpu.memory_space<vmem>>, vector<1x256xf32>
    tpu.vector_store %arg7[%c0_11, %c0_12], %28 {strides = array<i32>} : memref<2x256xf32, #tpu.memory_space<vmem>>, vector<1x256xf32>,
    %c0_13 = arith.constant 0 : index
    %c4 = arith.constant 4 : index
    %c0_14 = arith.constant 0 : index
    %30 = vector.load %arg4[%c0_13, %c4, %c0_14] : memref<1x8x256xf32, #tpu.memory_space<vmem>>, vector<1x4x256xf32>
    %31 = vector.shape_cast %30 : vector<1x4x256xf32> to vector<4x256xf32>
    %cst_15 = arith.constant 0.000000e+00 : f32
    %32 = vector.broadcast %cst_15 : f32 to vector<4x256xf32>
    %33 = arith.maximumf %31, %32 : vector<4x256xf32>
    %34 = math.absf %31 : vector<4x256xf32>
    %cst_16 = arith.constant 0.000000e+00 : f32
    %35 = vector.broadcast %cst_16 : f32 to vector<4x256xf32>
    %36 = arith.subf %35, %34 : vector<4x256xf32>
    %37 = math.exp %36 : vector<4x256xf32>
    %cst_17 = arith.constant 1.000000e+00 : f32
    %38 = vector.broadcast %cst_17 : f32 to vector<4x256xf32>
    %39 = arith.addf %38, %37 : vector<4x256xf32>
    %40 = math.log %39 : vector<4x256xf32>
    %41 = arith.addf %33, %40 : vector<4x256xf32>
    %42 = arith.subf %31, %41 : vector<4x256xf32>
    %cst_18 = arith.constant -9.21034049 : f32
    %cst_19 = arith.constant -1.000050e-04 : f32
    %43 = vector.broadcast %cst_18 : f32 to vector<4x256xf32>
    %44 = arith.maximumf %43, %42 : vector<4x256xf32>
    %45 = vector.broadcast %cst_19 : f32 to vector<4x256xf32>
    %46 = arith.minimumf %45, %44 : vector<4x256xf32>
    %cst_20 = arith.constant 0.000000e+00 : f32
    %47 = vector.broadcast %cst_20 : f32 to vector<4x256xf32>
    %48 = arith.subf %47, %41 : vector<4x256xf32>
    %cst_21 = arith.constant -9.21034049 : f32
    %cst_22 = arith.constant -1.000050e-04 : f32
    %49 = vector.broadcast %cst_21 : f32 to vector<4x256xf32>
    %50 = arith.maximumf %49, %48 : vector<4x256xf32>
    %51 = vector.broadcast %cst_22 : f32 to vector<4x256xf32>
    %52 = arith.minimumf %51, %50 : vector<4x256xf32>
    %cst_23 = arith.constant 2.000000e+00 : f32
    %53 = vector.broadcast %cst_23 : f32 to vector<4x256xf32>
    %54 = arith.mulf %53, %46 : vector<4x256xf32>
    %55 = math.exp %54 : vector<4x256xf32>
    %56 = arith.mulf %52, %55 : vector<4x256xf32>
    %cst_24 = arith.constant dense<0.000000e+00> : vector<256xf32>
    %57 = vector.multi_reduction <add>, %56, %cst_24 [0] : vector<4x256xf32> to vector<256xf32>
    %58 = vector.shape_cast %57 : vector<256xf32> to vector<1x256xf32>
    %c1 = arith.constant 1 : index
    %c0_25 = arith.constant 0 : index
    %59 = vector.load %arg7[%c1, %c0_25] : memref<2x256xf32, #tpu.memory_space<vmem>>, vector<1x256xf32>
    tpu.vector_store %arg7[%c1, %c0_25], %58 {strides = array<i32>} : memref<2x256xf32, #tpu.memory_space<vmem>>, vector<1x256xf32>,
    %cst_26 = arith.constant 0.000000e+00 : f32
    %60 = vector.broadcast %cst_26 : f32 to vector<8x128xf32>
    %c0_27 = arith.constant 0 : index
    %c0_28 = arith.constant 0 : index
    %c0_29 = arith.constant 0 : index
    %61 = vector.load %arg6[%c0_27, %c0_28, %c0_29] : memref<1x8x128xf32, #tpu.memory_space<vmem>>, vector<1x8x128xf32>
    %62 = vector.shape_cast %61 : vector<1x8x128xf32> to vector<8x128xf32>
    %63 = vector.shape_cast %60 : vector<8x128xf32> to vector<1x8x128xf32>
    tpu.vector_store %arg6[%c0_27, %c0_28, %c0_29], %63 {strides = array<i32>} : memref<1x8x128xf32, #tpu.memory_space<vmem>>, vector<1x8x128xf32>,
    %c0_30 = arith.constant 0 : index
    %c0_31 = arith.constant 0 : index
    %64 = vector.load %arg3[%c0_30, %c0_31] : memref<2x256xf32, #tpu.memory_space<vmem>>, vector<1x256xf32>
    %c1_32 = arith.constant 1 : index
    %c0_33 = arith.constant 0 : index
    %65 = vector.load %arg3[%c1_32, %c0_33] : memref<2x256xf32, #tpu.memory_space<vmem>>, vector<1x256xf32>
    %66 = arith.index_cast %arg0 : i32 to index
    %c0_34 = arith.constant 0 : index
    %67 = memref.load %arg1[%66, %c0_34] : memref<2x8xi32, #tpu.memory_space<smem>>
    %c0_35 = arith.constant 0 : index
    %68 = arith.index_cast %67 : i32 to index
    %c0_36 = arith.constant 0 : index
    %69 = vector.load %arg5[%c0_35, %68, %c0_36] : memref<1x4x256xf32, #tpu.memory_space<vmem>>, vector<1x1x256xf32>
    %70 = vector.shape_cast %69 : vector<1x1x256xf32> to vector<1x256xf32>
    %c0_37 = arith.constant 0 : index
    %c0_38 = arith.constant 0 : index
    %71 = vector.load %arg8[%c0_37, %c0_38] : memref<8x256xf32, #tpu.memory_space<vmem>>, vector<1x256xf32>
    tpu.vector_store %arg8[%c0_37, %c0_38], %70 {strides = array<i32>} : memref<8x256xf32, #tpu.memory_space<vmem>>, vector<1x256xf32>,
    %c0_i32 = arith.constant 0 : i32
    %72 = arith.addi %c0_i32, %67 : i32
    %c0_39 = arith.constant 0 : index
    %73 = arith.index_cast %72 : i32 to index
    %c0_40 = arith.constant 0 : index
    %74 = vector.load %arg4[%c0_39, %73, %c0_40] : memref<1x8x256xf32, #tpu.memory_space<vmem>>, vector<1x1x256xf32>
    %75 = vector.shape_cast %74 : vector<1x1x256xf32> to vector<1x256xf32>
    %c0_41 = arith.constant 0 : index
    %c0_42 = arith.constant 0 : index
    %76 = vector.load %arg9[%c0_41, %c0_42] : memref<16x256xf32, #tpu.memory_space<vmem>>, vector<1x256xf32>
    tpu.vector_store %arg9[%c0_41, %c0_42], %75 {strides = array<i32>} : memref<16x256xf32, #tpu.memory_space<vmem>>, vector<1x256xf32>,
    %c4_i32 = arith.constant 4 : i32
    %77 = arith.addi %c4_i32, %67 : i32
    %c0_43 = arith.constant 0 : index
    %78 = arith.index_cast %77 : i32 to index
    %c0_44 = arith.constant 0 : index
    %79 = vector.load %arg4[%c0_43, %78, %c0_44] : memref<1x8x256xf32, #tpu.memory_space<vmem>>, vector<1x1x256xf32>
    %80 = vector.shape_cast %79 : vector<1x1x256xf32> to vector<1x256xf32>
    %c8 = arith.constant 8 : index
    %c0_45 = arith.constant 0 : index
    %81 = vector.load %arg9[%c8, %c0_45] : memref<16x256xf32, #tpu.memory_space<vmem>>, vector<1x256xf32>
    tpu.vector_store %arg9[%c8, %c0_45], %80 {strides = array<i32>} : memref<16x256xf32, #tpu.memory_space<vmem>>, vector<1x256xf32>,
    %82 = arith.index_cast %arg0 : i32 to index
    %c1_46 = arith.constant 1 : index
    %83 = memref.load %arg1[%82, %c1_46] : memref<2x8xi32, #tpu.memory_space<smem>>
    %c0_47 = arith.constant 0 : index
    %84 = arith.index_cast %83 : i32 to index
    %c0_48 = arith.constant 0 : index
    %85 = vector.load %arg5[%c0_47, %84, %c0_48] : memref<1x4x256xf32, #tpu.memory_space<vmem>>, vector<1x1x256xf32>
    %86 = vector.shape_cast %85 : vector<1x1x256xf32> to vector<1x256xf32>
    %c1_49 = arith.constant 1 : index
    %c0_50 = arith.constant 0 : index
    %87 = vector.load %arg8[%c1_49, %c0_50] : memref<8x256xf32, #tpu.memory_space<vmem>>, vector<1x256xf32>
    tpu.vector_store %arg8[%c1_49, %c0_50], %86 {strides = array<i32>} : memref<8x256xf32, #tpu.memory_space<vmem>>, vector<1x256xf32>,
    %c0_i32_51 = arith.constant 0 : i32
    %88 = arith.addi %c0_i32_51, %83 : i32
    %c0_52 = arith.constant 0 : index
    %89 = arith.index_cast %88 : i32 to index
    %c0_53 = arith.constant 0 : index
    %90 = vector.load %arg4[%c0_52, %89, %c0_53] : memref<1x8x256xf32, #tpu.memory_space<vmem>>, vector<1x1x256xf32>
    %91 = vector.shape_cast %90 : vector<1x1x256xf32> to vector<1x256xf32>
    %c1_54 = arith.constant 1 : index
    %c0_55 = arith.constant 0 : index
    %92 = vector.load %arg9[%c1_54, %c0_55] : memref<16x256xf32, #tpu.memory_space<vmem>>, vector<1x256xf32>
    tpu.vector_store %arg9[%c1_54, %c0_55], %91 {strides = array<i32>} : memref<16x256xf32, #tpu.memory_space<vmem>>, vector<1x256xf32>,
    %c4_i32_56 = arith.constant 4 : i32
    %93 = arith.addi %c4_i32_56, %83 : i32
    %c0_57 = arith.constant 0 : index
    %94 = arith.index_cast %93 : i32 to index
    %c0_58 = arith.constant 0 : index
    %95 = vector.load %arg4[%c0_57, %94, %c0_58] : memref<1x8x256xf32, #tpu.memory_space<vmem>>, vector<1x1x256xf32>
    %96 = vector.shape_cast %95 : vector<1x1x256xf32> to vector<1x256xf32>
    %c9 = arith.constant 9 : index
    %c0_59 = arith.constant 0 : index
    %97 = vector.load %arg9[%c9, %c0_59] : memref<16x256xf32, #tpu.memory_space<vmem>>, vector<1x256xf32>
    tpu.vector_store %arg9[%c9, %c0_59], %96 {strides = array<i32>} : memref<16x256xf32, #tpu.memory_space<vmem>>, vector<1x256xf32>,
    %98 = arith.index_cast %arg0 : i32 to index
    %c2 = arith.constant 2 : index
    %99 = memref.load %arg1[%98, %c2] : memref<2x8xi32, #tpu.memory_space<smem>>
    %c0_60 = arith.constant 0 : index
    %100 = arith.index_cast %99 : i32 to index
    %c0_61 = arith.constant 0 : index
    %101 = vector.load %arg5[%c0_60, %100, %c0_61] : memref<1x4x256xf32, #tpu.memory_space<vmem>>, vector<1x1x256xf32>
    %102 = vector.shape_cast %101 : vector<1x1x256xf32> to vector<1x256xf32>
    %c2_62 = arith.constant 2 : index
    %c0_63 = arith.constant 0 : index
    %103 = vector.load %arg8[%c2_62, %c0_63] : memref<8x256xf32, #tpu.memory_space<vmem>>, vector<1x256xf32>
    tpu.vector_store %arg8[%c2_62, %c0_63], %102 {strides = array<i32>} : memref<8x256xf32, #tpu.memory_space<vmem>>, vector<1x256xf32>,
    %c0_i32_64 = arith.constant 0 : i32
    %104 = arith.addi %c0_i32_64, %99 : i32
    %c0_65 = arith.constant 0 : index
    %105 = arith.index_cast %104 : i32 to index
    %c0_66 = arith.constant 0 : index
    %106 = vector.load %arg4[%c0_65, %105, %c0_66] : memref<1x8x256xf32, #tpu.memory_space<vmem>>, vector<1x1x256xf32>
    %107 = vector.shape_cast %106 : vector<1x1x256xf32> to vector<1x256xf32>
    %c2_67 = arith.constant 2 : index
    %c0_68 = arith.constant 0 : index
    %108 = vector.load %arg9[%c2_67, %c0_68] : memref<16x256xf32, #tpu.memory_space<vmem>>, vector<1x256xf32>
    tpu.vector_store %arg9[%c2_67, %c0_68], %107 {strides = array<i32>} : memref<16x256xf32, #tpu.memory_space<vmem>>, vector<1x256xf32>,
    %c4_i32_69 = arith.constant 4 : i32
    %109 = arith.addi %c4_i32_69, %99 : i32
    %c0_70 = arith.constant 0 : index
    %110 = arith.index_cast %109 : i32 to index
    %c0_71 = arith.constant 0 : index
    %111 = vector.load %arg4[%c0_70, %110, %c0_71] : memref<1x8x256xf32, #tpu.memory_space<vmem>>, vector<1x1x256xf32>
    %112 = vector.shape_cast %111 : vector<1x1x256xf32> to vector<1x256xf32>
    %c10 = arith.constant 10 : index
    %c0_72 = arith.constant 0 : index
    %113 = vector.load %arg9[%c10, %c0_72] : memref<16x256xf32, #tpu.memory_space<vmem>>, vector<1x256xf32>
    tpu.vector_store %arg9[%c10, %c0_72], %112 {strides = array<i32>} : memref<16x256xf32, #tpu.memory_space<vmem>>, vector<1x256xf32>,
    %114 = arith.index_cast %arg0 : i32 to index
    %c3 = arith.constant 3 : index
    %115 = memref.load %arg1[%114, %c3] : memref<2x8xi32, #tpu.memory_space<smem>>
    %c0_73 = arith.constant 0 : index
    %116 = arith.index_cast %115 : i32 to index
    %c0_74 = arith.constant 0 : index
    %117 = vector.load %arg5[%c0_73, %116, %c0_74] : memref<1x4x256xf32, #tpu.memory_space<vmem>>, vector<1x1x256xf32>
    %118 = vector.shape_cast %117 : vector<1x1x256xf32> to vector<1x256xf32>
    %c3_75 = arith.constant 3 : index
    %c0_76 = arith.constant 0 : index
    %119 = vector.load %arg8[%c3_75, %c0_76] : memref<8x256xf32, #tpu.memory_space<vmem>>, vector<1x256xf32>
    tpu.vector_store %arg8[%c3_75, %c0_76], %118 {strides = array<i32>} : memref<8x256xf32, #tpu.memory_space<vmem>>, vector<1x256xf32>,
    %c0_i32_77 = arith.constant 0 : i32
    %120 = arith.addi %c0_i32_77, %115 : i32
    %c0_78 = arith.constant 0 : index
    %121 = arith.index_cast %120 : i32 to index
    %c0_79 = arith.constant 0 : index
    %122 = vector.load %arg4[%c0_78, %121, %c0_79] : memref<1x8x256xf32, #tpu.memory_space<vmem>>, vector<1x1x256xf32>
    %123 = vector.shape_cast %122 : vector<1x1x256xf32> to vector<1x256xf32>
    %c3_80 = arith.constant 3 : index
    %c0_81 = arith.constant 0 : index
    %124 = vector.load %arg9[%c3_80, %c0_81] : memref<16x256xf32, #tpu.memory_space<vmem>>, vector<1x256xf32>
    tpu.vector_store %arg9[%c3_80, %c0_81], %123 {strides = array<i32>} : memref<16x256xf32, #tpu.memory_space<vmem>>, vector<1x256xf32>,
    %c4_i32_82 = arith.constant 4 : i32
    %125 = arith.addi %c4_i32_82, %115 : i32
    %c0_83 = arith.constant 0 : index
    %126 = arith.index_cast %125 : i32 to index
    %c0_84 = arith.constant 0 : index
    %127 = vector.load %arg4[%c0_83, %126, %c0_84] : memref<1x8x256xf32, #tpu.memory_space<vmem>>, vector<1x1x256xf32>
    %128 = vector.shape_cast %127 : vector<1x1x256xf32> to vector<1x256xf32>
    %c11 = arith.constant 11 : index
    %c0_85 = arith.constant 0 : index
    %129 = vector.load %arg9[%c11, %c0_85] : memref<16x256xf32, #tpu.memory_space<vmem>>, vector<1x256xf32>
    tpu.vector_store %arg9[%c11, %c0_85], %128 {strides = array<i32>} : memref<16x256xf32, #tpu.memory_space<vmem>>, vector<1x256xf32>,
    %130 = arith.index_cast %arg0 : i32 to index
    %c4_86 = arith.constant 4 : index
    %131 = memref.load %arg1[%130, %c4_86] : memref<2x8xi32, #tpu.memory_space<smem>>
    %c0_87 = arith.constant 0 : index
    %132 = arith.index_cast %131 : i32 to index
    %c0_88 = arith.constant 0 : index
    %133 = vector.load %arg5[%c0_87, %132, %c0_88] : memref<1x4x256xf32, #tpu.memory_space<vmem>>, vector<1x1x256xf32>
    %134 = vector.shape_cast %133 : vector<1x1x256xf32> to vector<1x256xf32>
    %c4_89 = arith.constant 4 : index
    %c0_90 = arith.constant 0 : index
    %135 = vector.load %arg8[%c4_89, %c0_90] : memref<8x256xf32, #tpu.memory_space<vmem>>, vector<1x256xf32>
    tpu.vector_store %arg8[%c4_89, %c0_90], %134 {strides = array<i32>} : memref<8x256xf32, #tpu.memory_space<vmem>>, vector<1x256xf32>,
    %c0_i32_91 = arith.constant 0 : i32
    %136 = arith.addi %c0_i32_91, %131 : i32
    %c0_92 = arith.constant 0 : index
    %137 = arith.index_cast %136 : i32 to index
    %c0_93 = arith.constant 0 : index
    %138 = vector.load %arg4[%c0_92, %137, %c0_93] : memref<1x8x256xf32, #tpu.memory_space<vmem>>, vector<1x1x256xf32>
    %139 = vector.shape_cast %138 : vector<1x1x256xf32> to vector<1x256xf32>
    %c4_94 = arith.constant 4 : index
    %c0_95 = arith.constant 0 : index
    %140 = vector.load %arg9[%c4_94, %c0_95] : memref<16x256xf32, #tpu.memory_space<vmem>>, vector<1x256xf32>
    tpu.vector_store %arg9[%c4_94, %c0_95], %139 {strides = array<i32>} : memref<16x256xf32, #tpu.memory_space<vmem>>, vector<1x256xf32>,
    %c4_i32_96 = arith.constant 4 : i32
    %141 = arith.addi %c4_i32_96, %131 : i32
    %c0_97 = arith.constant 0 : index
    %142 = arith.index_cast %141 : i32 to index
    %c0_98 = arith.constant 0 : index
    %143 = vector.load %arg4[%c0_97, %142, %c0_98] : memref<1x8x256xf32, #tpu.memory_space<vmem>>, vector<1x1x256xf32>
    %144 = vector.shape_cast %143 : vector<1x1x256xf32> to vector<1x256xf32>
    %c12 = arith.constant 12 : index
    %c0_99 = arith.constant 0 : index
    %145 = vector.load %arg9[%c12, %c0_99] : memref<16x256xf32, #tpu.memory_space<vmem>>, vector<1x256xf32>
    tpu.vector_store %arg9[%c12, %c0_99], %144 {strides = array<i32>} : memref<16x256xf32, #tpu.memory_space<vmem>>, vector<1x256xf32>,
    %146 = arith.index_cast %arg0 : i32 to index
    %c5 = arith.constant 5 : index
    %147 = memref.load %arg1[%146, %c5] : memref<2x8xi32, #tpu.memory_space<smem>>
    %c0_100 = arith.constant 0 : index
    %148 = arith.index_cast %147 : i32 to index
    %c0_101 = arith.constant 0 : index
    %149 = vector.load %arg5[%c0_100, %148, %c0_101] : memref<1x4x256xf32, #tpu.memory_space<vmem>>, vector<1x1x256xf32>
    %150 = vector.shape_cast %149 : vector<1x1x256xf32> to vector<1x256xf32>
    %c5_102 = arith.constant 5 : index
    %c0_103 = arith.constant 0 : index
    %151 = vector.load %arg8[%c5_102, %c0_103] : memref<8x256xf32, #tpu.memory_space<vmem>>, vector<1x256xf32>
    tpu.vector_store %arg8[%c5_102, %c0_103], %150 {strides = array<i32>} : memref<8x256xf32, #tpu.memory_space<vmem>>, vector<1x256xf32>,
    %c0_i32_104 = arith.constant 0 : i32
    %152 = arith.addi %c0_i32_104, %147 : i32
    %c0_105 = arith.constant 0 : index
    %153 = arith.index_cast %152 : i32 to index
    %c0_106 = arith.constant 0 : index
    %154 = vector.load %arg4[%c0_105, %153, %c0_106] : memref<1x8x256xf32, #tpu.memory_space<vmem>>, vector<1x1x256xf32>
    %155 = vector.shape_cast %154 : vector<1x1x256xf32> to vector<1x256xf32>
    %c5_107 = arith.constant 5 : index
    %c0_108 = arith.constant 0 : index
    %156 = vector.load %arg9[%c5_107, %c0_108] : memref<16x256xf32, #tpu.memory_space<vmem>>, vector<1x256xf32>
    tpu.vector_store %arg9[%c5_107, %c0_108], %155 {strides = array<i32>} : memref<16x256xf32, #tpu.memory_space<vmem>>, vector<1x256xf32>,
    %c4_i32_109 = arith.constant 4 : i32
    %157 = arith.addi %c4_i32_109, %147 : i32
    %c0_110 = arith.constant 0 : index
    %158 = arith.index_cast %157 : i32 to index
    %c0_111 = arith.constant 0 : index
    %159 = vector.load %arg4[%c0_110, %158, %c0_111] : memref<1x8x256xf32, #tpu.memory_space<vmem>>, vector<1x1x256xf32>
    %160 = vector.shape_cast %159 : vector<1x1x256xf32> to vector<1x256xf32>
    %c13 = arith.constant 13 : index
    %c0_112 = arith.constant 0 : index
    %161 = vector.load %arg9[%c13, %c0_112] : memref<16x256xf32, #tpu.memory_space<vmem>>, vector<1x256xf32>
    tpu.vector_store %arg9[%c13, %c0_112], %160 {strides = array<i32>} : memref<16x256xf32, #tpu.memory_space<vmem>>, vector<1x256xf32>,
    %162 = arith.index_cast %arg0 : i32 to index
    %c6 = arith.constant 6 : index
    %163 = memref.load %arg1[%162, %c6] : memref<2x8xi32, #tpu.memory_space<smem>>
    %c0_113 = arith.constant 0 : index
    %164 = arith.index_cast %163 : i32 to index
    %c0_114 = arith.constant 0 : index
    %165 = vector.load %arg5[%c0_113, %164, %c0_114] : memref<1x4x256xf32, #tpu.memory_space<vmem>>, vector<1x1x256xf32>
    %166 = vector.shape_cast %165 : vector<1x1x256xf32> to vector<1x256xf32>
    %c6_115 = arith.constant 6 : index
    %c0_116 = arith.constant 0 : index
    %167 = vector.load %arg8[%c6_115, %c0_116] : memref<8x256xf32, #tpu.memory_space<vmem>>, vector<1x256xf32>
    tpu.vector_store %arg8[%c6_115, %c0_116], %166 {strides = array<i32>} : memref<8x256xf32, #tpu.memory_space<vmem>>, vector<1x256xf32>,
    %c0_i32_117 = arith.constant 0 : i32
    %168 = arith.addi %c0_i32_117, %163 : i32
    %c0_118 = arith.constant 0 : index
    %169 = arith.index_cast %168 : i32 to index
    %c0_119 = arith.constant 0 : index
    %170 = vector.load %arg4[%c0_118, %169, %c0_119] : memref<1x8x256xf32, #tpu.memory_space<vmem>>, vector<1x1x256xf32>
    %171 = vector.shape_cast %170 : vector<1x1x256xf32> to vector<1x256xf32>
    %c6_120 = arith.constant 6 : index
    %c0_121 = arith.constant 0 : index
    %172 = vector.load %arg9[%c6_120, %c0_121] : memref<16x256xf32, #tpu.memory_space<vmem>>, vector<1x256xf32>
    tpu.vector_store %arg9[%c6_120, %c0_121], %171 {strides = array<i32>} : memref<16x256xf32, #tpu.memory_space<vmem>>, vector<1x256xf32>,
    %c4_i32_122 = arith.constant 4 : i32
    %173 = arith.addi %c4_i32_122, %163 : i32
    %c0_123 = arith.constant 0 : index
    %174 = arith.index_cast %173 : i32 to index
    %c0_124 = arith.constant 0 : index
    %175 = vector.load %arg4[%c0_123, %174, %c0_124] : memref<1x8x256xf32, #tpu.memory_space<vmem>>, vector<1x1x256xf32>
    %176 = vector.shape_cast %175 : vector<1x1x256xf32> to vector<1x256xf32>
    %c14 = arith.constant 14 : index
    %c0_125 = arith.constant 0 : index
    %177 = vector.load %arg9[%c14, %c0_125] : memref<16x256xf32, #tpu.memory_space<vmem>>, vector<1x256xf32>
    tpu.vector_store %arg9[%c14, %c0_125], %176 {strides = array<i32>} : memref<16x256xf32, #tpu.memory_space<vmem>>, vector<1x256xf32>,
    %178 = arith.index_cast %arg0 : i32 to index
    %c7 = arith.constant 7 : index
    %179 = memref.load %arg1[%178, %c7] : memref<2x8xi32, #tpu.memory_space<smem>>
    %c0_126 = arith.constant 0 : index
    %180 = arith.index_cast %179 : i32 to index
    %c0_127 = arith.constant 0 : index
    %181 = vector.load %arg5[%c0_126, %180, %c0_127] : memref<1x4x256xf32, #tpu.memory_space<vmem>>, vector<1x1x256xf32>
    %182 = vector.shape_cast %181 : vector<1x1x256xf32> to vector<1x256xf32>
    %c7_128 = arith.constant 7 : index
    %c0_129 = arith.constant 0 : index
    %183 = vector.load %arg8[%c7_128, %c0_129] : memref<8x256xf32, #tpu.memory_space<vmem>>, vector<1x256xf32>
    tpu.vector_store %arg8[%c7_128, %c0_129], %182 {strides = array<i32>} : memref<8x256xf32, #tpu.memory_space<vmem>>, vector<1x256xf32>,
    %c0_i32_130 = arith.constant 0 : i32
    %184 = arith.addi %c0_i32_130, %179 : i32
    %c0_131 = arith.constant 0 : index
    %185 = arith.index_cast %184 : i32 to index
    %c0_132 = arith.constant 0 : index
    %186 = vector.load %arg4[%c0_131, %185, %c0_132] : memref<1x8x256xf32, #tpu.memory_space<vmem>>, vector<1x1x256xf32>
    %187 = vector.shape_cast %186 : vector<1x1x256xf32> to vector<1x256xf32>
    %c7_133 = arith.constant 7 : index
    %c0_134 = arith.constant 0 : index
    %188 = vector.load %arg9[%c7_133, %c0_134] : memref<16x256xf32, #tpu.memory_space<vmem>>, vector<1x256xf32>
    tpu.vector_store %arg9[%c7_133, %c0_134], %187 {strides = array<i32>} : memref<16x256xf32, #tpu.memory_space<vmem>>, vector<1x256xf32>,
    %c4_i32_135 = arith.constant 4 : i32
    %189 = arith.addi %c4_i32_135, %179 : i32
    %c0_136 = arith.constant 0 : index
    %190 = arith.index_cast %189 : i32 to index
    %c0_137 = arith.constant 0 : index
    %191 = vector.load %arg4[%c0_136, %190, %c0_137] : memref<1x8x256xf32, #tpu.memory_space<vmem>>, vector<1x1x256xf32>
    %192 = vector.shape_cast %191 : vector<1x1x256xf32> to vector<1x256xf32>
    %c15 = arith.constant 15 : index
    %c0_138 = arith.constant 0 : index
    %193 = vector.load %arg9[%c15, %c0_138] : memref<16x256xf32, #tpu.memory_space<vmem>>, vector<1x256xf32>
    tpu.vector_store %arg9[%c15, %c0_138], %192 {strides = array<i32>} : memref<16x256xf32, #tpu.memory_space<vmem>>, vector<1x256xf32>,
    %c0_139 = arith.constant 0 : index
    %c0_140 = arith.constant 0 : index
    %c0_141 = arith.constant 0 : index
    %194 = vector.load %arg2[%c0_139, %c0_140, %c0_141] : memref<1x8x8xf32, #tpu.memory_space<vmem>>, vector<1x8x1xf32>
    %195 = vector.shape_cast %194 : vector<1x8x1xf32> to vector<8x1xf32>
    %c0_142 = arith.constant 0 : index
    %c0_143 = arith.constant 0 : index
    %c1_144 = arith.constant 1 : index
    %196 = vector.load %arg2[%c0_142, %c0_143, %c1_144] : memref<1x8x8xf32, #tpu.memory_space<vmem>>, vector<1x8x1xf32>
    %197 = vector.shape_cast %196 : vector<1x8x1xf32> to vector<8x1xf32>
    %c0_145 = arith.constant 0 : index
    %c0_146 = arith.constant 0 : index
    %c2_147 = arith.constant 2 : index
    %198 = vector.load %arg2[%c0_145, %c0_146, %c2_147] : memref<1x8x8xf32, #tpu.memory_space<vmem>>, vector<1x8x1xf32>
    %199 = vector.shape_cast %198 : vector<1x8x1xf32> to vector<8x1xf32>
    %c0_148 = arith.constant 0 : index
    %c0_149 = arith.constant 0 : index
    %c3_150 = arith.constant 3 : index
    %200 = vector.load %arg2[%c0_148, %c0_149, %c3_150] : memref<1x8x8xf32, #tpu.memory_space<vmem>>, vector<1x8x1xf32>
    %201 = vector.shape_cast %200 : vector<1x8x1xf32> to vector<8x1xf32>
    %202 = vector.broadcast %64 : vector<1x256xf32> to vector<8x256xf32>
    %203 = vector.broadcast %195 : vector<8x1xf32> to vector<8x256xf32>
    %204 = arith.cmpf oge, %202, %203 : vector<8x256xf32>
    %205 = vector.broadcast %64 : vector<1x256xf32> to vector<8x256xf32>
    %206 = vector.broadcast %197 : vector<8x1xf32> to vector<8x256xf32>
    %207 = arith.cmpf olt, %205, %206 : vector<8x256xf32>
    %208 = arith.andi %204, %207 : vector<8x256xi1>
    %209 = vector.broadcast %65 : vector<1x256xf32> to vector<8x256xf32>
    %210 = vector.broadcast %199 : vector<8x1xf32> to vector<8x256xf32>
    %211 = arith.cmpf oge, %209, %210 : vector<8x256xf32>
    %212 = arith.andi %208, %211 : vector<8x256xi1>
    %213 = vector.broadcast %65 : vector<1x256xf32> to vector<8x256xf32>
    %214 = vector.broadcast %201 : vector<8x1xf32> to vector<8x256xf32>
    %215 = arith.cmpf olt, %213, %214 : vector<8x256xf32>
    %216 = arith.andi %212, %215 : vector<8x256xi1>
    %217 = arith.extui %216 : vector<8x256xi1> to vector<8x256xi32>
    %218 = arith.sitofp %217 : vector<8x256xi32> to vector<8x256xf32>
    %c0_151 = arith.constant 0 : index
    %c0_152 = arith.constant 0 : index
    %219 = vector.load %arg8[%c0_151, %c0_152] : memref<8x256xf32, #tpu.memory_space<vmem>>, vector<8x256xf32>
    %cst_153 = arith.constant 1.000000e+00 : f32
    %220 = vector.broadcast %cst_153 : f32 to vector<8x256xf32>
    %221 = arith.cmpf oeq, %219, %220 : vector<8x256xf32>
    %222 = arith.extui %221 : vector<8x256xi1> to vector<8x256xi32>
    %223 = arith.sitofp %222 : vector<8x256xi32> to vector<8x256xf32>
    %224 = arith.mulf %223, %218 : vector<8x256xf32>
    %cst_154 = arith.constant 1.000000e+00 : f32
    %225 = vector.broadcast %cst_154 : f32 to vector<8x256xf32>
    %226 = arith.cmpf olt, %219, %225 : vector<8x256xf32>
    %227 = arith.extui %226 : vector<8x256xi1> to vector<8x256xi32>
    %228 = arith.sitofp %227 : vector<8x256xi32> to vector<8x256xf32>
    %229 = arith.mulf %228, %218 : vector<8x256xf32>
    %cst_155 = arith.constant 1.000000e+00 : f32
    %230 = vector.broadcast %cst_155 : f32 to vector<8x256xf32>
    %231 = arith.subf %230, %219 : vector<8x256xf32>
    %232 = arith.mulf %231, %231 : vector<8x256xf32>
    %233 = arith.mulf %232, %232 : vector<8x256xf32>
    %cst_156 = arith.constant dense<0.000000e+00> : vector<8xf32>
    %234 = vector.multi_reduction <add>, %224, %cst_156 [1] : vector<8x256xf32> to vector<8xf32>
    %235 = vector.shape_cast %234 : vector<8xf32> to vector<8x1xf32>
    %c0_157 = arith.constant 0 : index
    %c0_158 = arith.constant 0 : index
    %236 = vector.load %arg9[%c0_157, %c0_158] : memref<16x256xf32, #tpu.memory_space<vmem>>, vector<8x256xf32>
    %cst_159 = arith.constant 0.000000e+00 : f32
    %237 = vector.broadcast %cst_159 : f32 to vector<8x256xf32>
    %238 = arith.maximumf %236, %237 : vector<8x256xf32>
    %239 = math.absf %236 : vector<8x256xf32>
    %cst_160 = arith.constant 0.000000e+00 : f32
    %240 = vector.broadcast %cst_160 : f32 to vector<8x256xf32>
    %241 = arith.subf %240, %239 : vector<8x256xf32>
    %242 = math.exp %241 : vector<8x256xf32>
    %cst_161 = arith.constant 1.000000e+00 : f32
    %243 = vector.broadcast %cst_161 : f32 to vector<8x256xf32>
    %244 = arith.addf %243, %242 : vector<8x256xf32>
    %245 = math.log %244 : vector<8x256xf32>
    %246 = arith.addf %238, %245 : vector<8x256xf32>
    %247 = arith.subf %236, %246 : vector<8x256xf32>
    %cst_162 = arith.constant -9.21034049 : f32
    %cst_163 = arith.constant -1.000050e-04 : f32
    %248 = vector.broadcast %cst_162 : f32 to vector<8x256xf32>
    %249 = arith.maximumf %248, %247 : vector<8x256xf32>
    %250 = vector.broadcast %cst_163 : f32 to vector<8x256xf32>
    %251 = arith.minimumf %250, %249 : vector<8x256xf32>
    %cst_164 = arith.constant 0.000000e+00 : f32
    %252 = vector.broadcast %cst_164 : f32 to vector<8x256xf32>
    %253 = arith.subf %252, %246 : vector<8x256xf32>
    %cst_165 = arith.constant -9.21034049 : f32
    %cst_166 = arith.constant -1.000050e-04 : f32
    %254 = vector.broadcast %cst_165 : f32 to vector<8x256xf32>
    %255 = arith.maximumf %254, %253 : vector<8x256xf32>
    %256 = vector.broadcast %cst_166 : f32 to vector<8x256xf32>
    %257 = arith.minimumf %256, %255 : vector<8x256xf32>
    %cst_167 = arith.constant 2.000000e+00 : f32
    %258 = vector.broadcast %cst_167 : f32 to vector<8x256xf32>
    %259 = arith.mulf %258, %251 : vector<8x256xf32>
    %260 = math.exp %259 : vector<8x256xf32>
    %cst_168 = arith.constant 2.000000e+00 : f32
    %261 = vector.broadcast %cst_168 : f32 to vector<8x256xf32>
    %262 = arith.mulf %261, %257 : vector<8x256xf32>
    %263 = math.exp %262 : vector<8x256xf32>
    %264 = arith.mulf %251, %263 : vector<8x256xf32>
    %265 = arith.mulf %257, %260 : vector<8x256xf32>
    %c0_169 = arith.constant 0 : index
    %c0_170 = arith.constant 0 : index
    %266 = vector.load %arg7[%c0_169, %c0_170] : memref<2x256xf32, #tpu.memory_space<vmem>>, vector<1x256xf32>
    %267 = arith.mulf %264, %224 : vector<8x256xf32>
    %cst_171 = arith.constant dense<0.000000e+00> : vector<8xf32>
    %268 = vector.multi_reduction <add>, %267, %cst_171 [1] : vector<8x256xf32> to vector<8xf32>
    %269 = vector.shape_cast %268 : vector<8xf32> to vector<8x1xf32>
    %270 = arith.mulf %233, %229 : vector<8x256xf32>
    %271 = arith.mulf %265, %270 : vector<8x256xf32>
    %272 = vector.broadcast %266 : vector<1x256xf32> to vector<8x256xf32>
    %273 = arith.subf %272, %265 : vector<8x256xf32>
    %274 = arith.mulf %218, %273 : vector<8x256xf32>
    %275 = arith.addf %271, %274 : vector<8x256xf32>
    %cst_172 = arith.constant dense<0.000000e+00> : vector<8xf32>
    %276 = vector.multi_reduction <add>, %275, %cst_172 [1] : vector<8x256xf32> to vector<8xf32>
    %277 = vector.shape_cast %276 : vector<8xf32> to vector<8x1xf32>
    %cst_173 = arith.constant 0.000000e+00 : f32
    %278 = vector.broadcast %cst_173 : f32 to vector<8x1xf32>
    %279 = arith.cmpf oeq, %235, %278 : vector<8x1xf32>
    %cst_174 = arith.constant 0.000000e+00 : f32
    %280 = vector.broadcast %cst_174 : f32 to vector<8x1xf32>
    %281 = arith.subf %280, %277 : vector<8x1xf32>
    %282 = arith.addf %269, %277 : vector<8x1xf32>
    %cst_175 = arith.constant 0.000000e+00 : f32
    %283 = vector.broadcast %cst_175 : f32 to vector<8x1xf32>
    %284 = arith.subf %283, %282 : vector<8x1xf32>
    %cst_176 = arith.constant 1.000000e+00 : f32
    %285 = vector.broadcast %cst_176 : f32 to vector<8x1xf32>
    %286 = arith.maximumf %235, %285 : vector<8x1xf32>
    %287 = arith.divf %284, %286 : vector<8x1xf32>
    %288 = arith.select %279, %281, %287 : vector<8x1xi1>, vector<8x1xf32>
    %cst_177 = arith.constant 1.000000e+00 : f32
    %289 = vector.broadcast %cst_177 : f32 to vector<8x1xf32>
    %290 = arith.mulf %288, %289 : vector<8x1xf32>
    %c0_178 = arith.constant 0 : index
    %c0_179 = arith.constant 0 : index
    %c0_180 = arith.constant 0 : index
    %291 = vector.load %arg6[%c0_178, %c0_179, %c0_180] : memref<1x8x128xf32, #tpu.memory_space<vmem>>, vector<1x8x1xf32>
    %292 = vector.shape_cast %291 : vector<1x8x1xf32> to vector<8x1xf32>
    %293 = vector.shape_cast %290 : vector<8x1xf32> to vector<1x8x1xf32>
    tpu.vector_store %arg6[%c0_178, %c0_179, %c0_180], %293 {strides = array<i32>} : memref<1x8x128xf32, #tpu.memory_space<vmem>>, vector<1x8x1xf32>,
    %c8_181 = arith.constant 8 : index
    %c0_182 = arith.constant 0 : index
    %294 = vector.load %arg9[%c8_181, %c0_182] : memref<16x256xf32, #tpu.memory_space<vmem>>, vector<8x256xf32>
    %cst_183 = arith.constant 0.000000e+00 : f32
    %295 = vector.broadcast %cst_183 : f32 to vector<8x256xf32>
    %296 = arith.maximumf %294, %295 : vector<8x256xf32>
    %297 = math.absf %294 : vector<8x256xf32>
    %cst_184 = arith.constant 0.000000e+00 : f32
    %298 = vector.broadcast %cst_184 : f32 to vector<8x256xf32>
    %299 = arith.subf %298, %297 : vector<8x256xf32>
    %300 = math.exp %299 : vector<8x256xf32>
    %cst_185 = arith.constant 1.000000e+00 : f32
    %301 = vector.broadcast %cst_185 : f32 to vector<8x256xf32>
    %302 = arith.addf %301, %300 : vector<8x256xf32>
    %303 = math.log %302 : vector<8x256xf32>
    %304 = arith.addf %296, %303 : vector<8x256xf32>
    %305 = arith.subf %294, %304 : vector<8x256xf32>
    %cst_186 = arith.constant -9.21034049 : f32
    %cst_187 = arith.constant -1.000050e-04 : f32
    %306 = vector.broadcast %cst_186 : f32 to vector<8x256xf32>
    %307 = arith.maximumf %306, %305 : vector<8x256xf32>
    %308 = vector.broadcast %cst_187 : f32 to vector<8x256xf32>
    %309 = arith.minimumf %308, %307 : vector<8x256xf32>
    %cst_188 = arith.constant 0.000000e+00 : f32
    %310 = vector.broadcast %cst_188 : f32 to vector<8x256xf32>
    %311 = arith.subf %310, %304 : vector<8x256xf32>
    %cst_189 = arith.constant -9.21034049 : f32
    %cst_190 = arith.constant -1.000050e-04 : f32
    %312 = vector.broadcast %cst_189 : f32 to vector<8x256xf32>
    %313 = arith.maximumf %312, %311 : vector<8x256xf32>
    %314 = vector.broadcast %cst_190 : f32 to vector<8x256xf32>
    %315 = arith.minimumf %314, %313 : vector<8x256xf32>
    %cst_191 = arith.constant 2.000000e+00 : f32
    %316 = vector.broadcast %cst_191 : f32 to vector<8x256xf32>
    %317 = arith.mulf %316, %309 : vector<8x256xf32>
    %318 = math.exp %317 : vector<8x256xf32>
    %cst_192 = arith.constant 2.000000e+00 : f32
    %319 = vector.broadcast %cst_192 : f32 to vector<8x256xf32>
    %320 = arith.mulf %319, %315 : vector<8x256xf32>
    %321 = math.exp %320 : vector<8x256xf32>
    %322 = arith.mulf %309, %321 : vector<8x256xf32>
    %323 = arith.mulf %315, %318 : vector<8x256xf32>
    %c1_193 = arith.constant 1 : index
    %c0_194 = arith.constant 0 : index
    %324 = vector.load %arg7[%c1_193, %c0_194] : memref<2x256xf32, #tpu.memory_space<vmem>>, vector<1x256xf32>
    %325 = arith.mulf %322, %224 : vector<8x256xf32>
    %cst_195 = arith.constant dense<0.000000e+00> : vector<8xf32>
    %326 = vector.multi_reduction <add>, %325, %cst_195 [1] : vector<8x256xf32> to vector<8xf32>
    %327 = vector.shape_cast %326 : vector<8xf32> to vector<8x1xf32>
    %328 = arith.mulf %233, %229 : vector<8x256xf32>
    %329 = arith.mulf %323, %328 : vector<8x256xf32>
    %330 = vector.broadcast %324 : vector<1x256xf32> to vector<8x256xf32>
    %331 = arith.subf %330, %323 : vector<8x256xf32>
    %332 = arith.mulf %218, %331 : vector<8x256xf32>
    %333 = arith.addf %329, %332 : vector<8x256xf32>
    %cst_196 = arith.constant dense<0.000000e+00> : vector<8xf32>
    %334 = vector.multi_reduction <add>, %333, %cst_196 [1] : vector<8x256xf32> to vector<8xf32>
    %335 = vector.shape_cast %334 : vector<8xf32> to vector<8x1xf32>
    %cst_197 = arith.constant 0.000000e+00 : f32
    %336 = vector.broadcast %cst_197 : f32 to vector<8x1xf32>
    %337 = arith.cmpf oeq, %235, %336 : vector<8x1xf32>
    %cst_198 = arith.constant 0.000000e+00 : f32
    %338 = vector.broadcast %cst_198 : f32 to vector<8x1xf32>
    %339 = arith.subf %338, %335 : vector<8x1xf32>
    %340 = arith.addf %327, %335 : vector<8x1xf32>
    %cst_199 = arith.constant 0.000000e+00 : f32
    %341 = vector.broadcast %cst_199 : f32 to vector<8x1xf32>
    %342 = arith.subf %341, %340 : vector<8x1xf32>
    %cst_200 = arith.constant 1.000000e+00 : f32
    %343 = vector.broadcast %cst_200 : f32 to vector<8x1xf32>
    %344 = arith.maximumf %235, %343 : vector<8x1xf32>
    %345 = arith.divf %342, %344 : vector<8x1xf32>
    %346 = arith.select %337, %339, %345 : vector<8x1xi1>, vector<8x1xf32>
    %cst_201 = arith.constant 1.000000e+00 : f32
    %347 = vector.broadcast %cst_201 : f32 to vector<8x1xf32>
    %348 = arith.mulf %346, %347 : vector<8x1xf32>
    %c0_202 = arith.constant 0 : index
    %c0_203 = arith.constant 0 : index
    %c1_204 = arith.constant 1 : index
    %349 = vector.load %arg6[%c0_202, %c0_203, %c1_204] : memref<1x8x128xf32, #tpu.memory_space<vmem>>, vector<1x8x1xf32>
    %350 = vector.shape_cast %349 : vector<1x8x1xf32> to vector<8x1xf32>
    %351 = vector.shape_cast %348 : vector<8x1xf32> to vector<1x8x1xf32>
    tpu.vector_store %arg6[%c0_202, %c0_203, %c1_204], %351 {strides = array<i32>} : memref<1x8x128xf32, #tpu.memory_space<vmem>>, vector<1x8x1xf32>,
    return
  }
  func.func @transform_0(%arg0: i32) -> (i32, i32) {
    %c0_i32 = arith.constant 0 : i32
    %c0_i32_0 = arith.constant 0 : i32
    %c0_i32_1 = arith.constant 0 : i32
    return %c0_i32, %c0_i32_0 : i32, i32
  }
  func.func @transform_1(%arg0: i32) -> (i32, i32, i32) {
    %c0_i32 = arith.constant 0 : i32
    %c0_i32_0 = arith.constant 0 : i32
    %c0_i32_1 = arith.constant 0 : i32
    return %arg0, %c0_i32, %c0_i32_0 : i32, i32, i32
  }
  func.func @transform_2(%arg0: i32) -> (i32, i32) {
    %c0_i32 = arith.constant 0 : i32
    %c0_i32_0 = arith.constant 0 : i32
    %c0_i32_1 = arith.constant 0 : i32
    return %c0_i32, %c0_i32_0 : i32, i32
  }
  func.func @transform_3(%arg0: i32) -> (i32, i32, i32) {
    %c0_i32 = arith.constant 0 : i32
    %c0_i32_0 = arith.constant 0 : i32
    %c0_i32_1 = arith.constant 0 : i32
    return %arg0, %c0_i32, %c0_i32_0 : i32, i32, i32
  }
  func.func @transform_4(%arg0: i32) -> (i32, i32, i32) {
    %c0_i32 = arith.constant 0 : i32
    %c0_i32_0 = arith.constant 0 : i32
    %c0_i32_1 = arith.constant 0 : i32
    return %arg0, %c0_i32, %c0_i32_0 : i32, i32, i32
  }
  func.func @transform_5(%arg0: i32) -> (i32, i32, i32) {
    %c0_i32 = arith.constant 0 : i32
    %c0_i32_0 = arith.constant 0 : i32
    %c0_i32_1 = arith.constant 0 : i32
    return %arg0, %c0_i32, %c0_i32_0 : i32, i32, i32
  }
}

</mosaic_0001>

<llo_original>
// kernel: tpu_custom_call.1
$region0: #{tpu_custom_call.1}
  #allocation0 [shape = 'u32[]', space=smem, size = 0x4, offset = 0x4, fixed_abs, tag = 'smem constant byte address 0x4 - core index']
  #allocation1 [shape = 'u32[144,128]{1,0:T(1,128)}', space=vmem, size = 0x12000, scoped, tag = 'internal scratch']
  #allocation2 [shape = 'f32[2,256]{1,0:T(2,128)}', space=vmem, size = 0x800, scoped, tag = 'scratch operand']
  #allocation3 [shape = 'f32[8,256]{1,0:T(8,128)}', space=vmem, size = 0x2000, scoped, tag = 'scratch operand']
  #allocation4 [shape = 'f32[16,256]{1,0:T(8,128)}', space=vmem, size = 0x4000, scoped, tag = 'scratch operand']
  %s0 = inlined_call_operand.hbm [shape: s32[2,8], index: 0, kind: input, shape index: {}]
  %s1 = inlined_call_operand.hbm [shape: f32[2,8,8], index: 1, kind: input, shape index: {}]
  %s2 = inlined_call_operand.vmem [shape: f32[2,256], index: 2, kind: input, shape index: {}]
  %s3 = inlined_call_operand.hbm [shape: f32[2,8,256], index: 3, kind: input, shape index: {}]
  %s4 = inlined_call_operand.hbm [shape: f32[2,4,256], index: 4, kind: input, shape index: {}]
  %s5 = inlined_call_operand.hbm [shape: f32[2,8,128], index: 5, kind: output, shape index: {}]
  %s6 = sld [smem:[#allocation0]]
  $region69: #{tpu_custom_call.1} parent=0
    _
  %s8 = ssub.s32 1, %s6
  %s9 = scalar_select 0, %s8, %s6
  $region1: #{tpu_custom_call.1} parent=0
    #allocation5 [shape = 'u8[1024]{0}', space=smem, size = 0x400, scoped, tag = 'input window, operand 0, single buffered']
    #allocation6 [shape = 's32[2]{0}', space=sflag, size = 0x8, scoped, tag = 'scoped memory for tpu_custom_call.1']
    #allocation7 [shape = 's32[2]{0}', space=sflag, size = 0x8, scoped, tag = 'scoped memory for tpu_custom_call.1']
    #allocation8 [shape = 's32[2]{0}', space=sflag, size = 0x8, scoped, tag = 'scoped memory for tpu_custom_call.1']
    #allocation9 [shape = 'u8[8192]{0}', space=vmem, size = 0x2000, scoped, tag = 'input window, operand 1']
    #allocation10 [shape = 'u8[16384]{0}', space=vmem, size = 0x4000, scoped, tag = 'input window, operand 3']
    #allocation11 [shape = 's32[2]{0}', space=sflag, size = 0x8, scoped, tag = 'scoped memory for tpu_custom_call.1']
    #allocation12 [shape = 'u8[8192]{0}', space=vmem, size = 0x2000, scoped, tag = 'input window, operand 4']
    #allocation13 [shape = 'u8[8192]{0}', space=vmem, size = 0x2000, scoped, tag = 'output window, operand 0']
    %10 = vsyncpa [#allocation8], 0
    %11 = vsyncpa [#allocation6], 0
    %s12 = scalar_lea.sflag [#allocation6], 1
    %13 = vsyncpa %s12, 0
    %14 = vsyncpa [#allocation11], 0
    %s15 = scalar_lea.sflag [#allocation11], 1
    %16 = vsyncpa %s15, 0
    %17 = vsyncpa [#allocation7], 0
    %s18 = scalar_lea.sflag [#allocation7], 1
    %19 = vsyncpa %s18, 0
    loop: start=0, step=1, limit=4
    $region2: #{tpu_custom_call.1} parent=1 // loop_pre_header
      _
    $region3: #{tpu_custom_call.1} parent=1 // loop_header
      %s21 = sphi 0, %s25
      %p22 = scmp.ge.s32.totalorder %s21, 4
      %s29 = sphi 0, %s29
      %s31 = sphi 0, %s29
      %s32 = sphi 0, %s31
      %s46 = sphi 0, %s32
      %s52 = sphi 0, %s54
      %s55 = sphi 0, %s52
      %s56 = sphi 0, %s55
      %s72 = sphi 0, %s56
      %s76 = sphi 0, %s76
      %s78 = sphi 0, %s76
      %s79 = sphi 0, %s78
      %s93 = sphi 0, %s79
      %s99 = sphi 0, %s101
      %s102 = sphi 0, %s99
      %s103 = sphi 0, %s102
      %s119 = sphi 0, %s103
      %s125 = sphi 0, %s127
      %s128 = sphi 0, %s125
      %s129 = sphi 0, %s128
      %s145 = sphi 0, %s129
      %s151 = sphi 0, %s153
      %s154 = sphi 0, %s151
      %s155 = sphi 0, %s154
      %s171 = sphi 0, %s155
    $region4: #{tpu_custom_call.1} parent=1 // loop_header_branch
      %24 = sbr.rel (%p22) target = $region8
    $region5: #{tpu_custom_call.1} parent=1 // loop_body
      %s26 = ssub.s32 %s21, 1
      %s27 = ssub.s32 %s21, 2
      %s28 = sadd.s32 %s21, 1
      %s30 = sadd.s32 %s29, 1
      %p33 = scmp.eq.s32.totalorder %s21, 1
      %p34 = scmp.ne.s32.totalorder %s29, %s31
      %p35 = scmp.eq.s32.totalorder %s21, 0
      %p36 = por %p34, %p35
      %p37 = scmp.ne.s32.totalorder %s29, %s31
      %p38 = scmp.eq.s32.totalorder %s26, 1
      %p39 = por %p37, %p38
      %p40 = scmp.ne.s32.totalorder %s31, %s32
      %p41 = scmp.eq.s32.totalorder %s26, 0
      %p42 = por %p40, %p41
      %p43 = scmp.ne.s32.totalorder %s31, %s32
      %p44 = scmp.eq.s32.totalorder %s27, 1
      %p45 = por %p43, %p44
      %p47 = scmp.ne.s32.totalorder %s32, %s46
      %p48 = scmp.eq.s32.totalorder %s27, 0
      %p49 = por %p47, %p48
      %s50 = ssub.s32 %s21, %s28
      %p51 = scmp.eq.s32.totalorder %s50, 0
      %s53 = sadd.s32 %s52, 1
      %s54 = scalar_select %p51, %s52, %s53
      %p57 = pneg %p51
      %p58 = scmp.eq.s32.totalorder %s21, 1
      %p59 = por %p57, %p58
      %p60 = scmp.ne.s32.totalorder %s52, %s55
      %p61 = scmp.eq.s32.totalorder %s21, 0
      %p62 = por %p60, %p61
      %p63 = scmp.ne.s32.totalorder %s52, %s55
      %p64 = scmp.eq.s32.totalorder %s26, 1
      %p65 = por %p63, %p64
      %p66 = scmp.ne.s32.totalorder %s55, %s56
      %p67 = scmp.eq.s32.totalorder %s26, 0
      %p68 = por %p66, %p67
      %p69 = scmp.ne.s32.totalorder %s55, %s56
      %p70 = scmp.eq.s32.totalorder %s27, 1
      %p71 = por %p69, %p70
      %p73 = scmp.ne.s32.totalorder %s56, %s72
      %p74 = scmp.eq.s32.totalorder %s27, 0
      %p75 = por %p73, %p74
      %s77 = sadd.s32 %s76, 1
      %p80 = scmp.eq.s32.totalorder %s21, 1
      %p81 = scmp.ne.s32.totalorder %s76, %s78
      %p82 = scmp.eq.s32.totalorder %s21, 0
      %p83 = por %p81, %p82
      %p84 = scmp.ne.s32.totalorder %s76, %s78
      %p85 = scmp.eq.s32.totalorder %s26, 1
      %p86 = por %p84, %p85
      %p87 = scmp.ne.s32.totalorder %s78, %s79
      %p88 = scmp.eq.s32.totalorder %s26, 0
      %p89 = por %p87, %p88
      %p90 = scmp.ne.s32.totalorder %s78, %s79
      %p91 = scmp.eq.s32.totalorder %s27, 1
      %p92 = por %p90, %p91
      %p94 = scmp.ne.s32.totalorder %s79, %s93
      %p95 = scmp.eq.s32.totalorder %s27, 0
      %p96 = por %p94, %p95
      %s97 = ssub.s32 %s21, %s28
      %p98 = scmp.eq.s32.totalorder %s97, 0
      %s100 = sadd.s32 %s99, 1
      %s101 = scalar_select %p98, %s99, %s100
      %p104 = pneg %p98
      %p105 = scmp.eq.s32.totalorder %s21, 1
      %p106 = por %p104, %p105
      %p107 = scmp.ne.s32.totalorder %s99, %s102
      %p108 = scmp.eq.s32.totalorder %s21, 0
      %p109 = por %p107, %p108
      %p110 = scmp.ne.s32.totalorder %s99, %s102
      %p111 = scmp.eq.s32.totalorder %s26, 1
      %p112 = por %p110, %p111
      %p113 = scmp.ne.s32.totalorder %s102, %s103
      %p114 = scmp.eq.s32.totalorder %s26, 0
      %p115 = por %p113, %p114
      %p116 = scmp.ne.s32.totalorder %s102, %s103
      %p117 = scmp.eq.s32.totalorder %s27, 1
      %p118 = por %p116, %p117
      %p120 = scmp.ne.s32.totalorder %s103, %s119
      %p121 = scmp.eq.s32.totalorder %s27, 0
      %p122 = por %p120, %p121
      %s123 = ssub.s32 %s21, %s28
      %p124 = scmp.eq.s32.totalorder %s123, 0
      %s126 = sadd.s32 %s125, 1
      %s127 = scalar_select %p124, %s125, %s126
      %p130 = pneg %p124
      %p131 = scmp.eq.s32.totalorder %s21, 1
      %p132 = por %p130, %p131
      %p133 = scmp.ne.s32.totalorder %s125, %s128
      %p134 = scmp.eq.s32.totalorder %s21, 0
      %p135 = por %p133, %p134
      %p136 = scmp.ne.s32.totalorder %s125, %s128
      %p137 = scmp.eq.s32.totalorder %s26, 1
      %p138 = por %p136, %p137
      %p139 = scmp.ne.s32.totalorder %s128, %s129
      %p140 = scmp.eq.s32.totalorder %s26, 0
      %p141 = por %p139, %p140
      %p142 = scmp.ne.s32.totalorder %s128, %s129
      %p143 = scmp.eq.s32.totalorder %s27, 1
      %p144 = por %p142, %p143
      %p146 = scmp.ne.s32.totalorder %s129, %s145
      %p147 = scmp.eq.s32.totalorder %s27, 0
      %p148 = por %p146, %p147
      %s149 = ssub.s32 %s21, %s28
      %p150 = scmp.eq.s32.totalorder %s149, 0
      %s152 = sadd.s32 %s151, 1
      %s153 = scalar_select %p150, %s151, %s152
      %p156 = pneg %p150
      %p157 = scmp.eq.s32.totalorder %s21, 1
      %p158 = por %p156, %p157
      %p159 = scmp.ne.s32.totalorder %s151, %s154
      %p160 = scmp.eq.s32.totalorder %s21, 0
      %p161 = por %p159, %p160
      %p162 = scmp.ne.s32.totalorder %s151, %s154
      %p163 = scmp.eq.s32.totalorder %s26, 1
      %p164 = por %p162, %p163
      %p165 = scmp.ne.s32.totalorder %s154, %s155
      %p166 = scmp.eq.s32.totalorder %s26, 0
      %p167 = por %p165, %p166
      %p168 = scmp.ne.s32.totalorder %s154, %s155
      %p169 = scmp.eq.s32.totalorder %s27, 1
      %p170 = por %p168, %p169
      %p172 = scmp.ne.s32.totalorder %s155, %s171
      %p173 = scmp.eq.s32.totalorder %s27, 0
      %p174 = por %p172, %p173
      %p175 = scmp.le.s32.totalorder 1, %s21
      %p176 = scmp.lt.s32.totalorder %s21, 3
      %p177 = pnand %p175, %p176
      %p178 = pneg %p177
      // Predicated region
      $region9: #{tpu_custom_call.1} parent=5 // pred_check
        _
      $region10: #{tpu_custom_call.1} parent=5 // pred_check_branch
        %180 = sbr.rel (%p177) target = $region12
      $region11: #{tpu_custom_call.1} parent=5 // pred_region
        %s181 = ssub.s32 %s21, 1
        // Predicated region
        $region13: #{tpu_custom_call.1} parent=11 // pred_check
          %p182 = pneg %p42
        $region14: #{tpu_custom_call.1} parent=11 // pred_check_branch
          %184 = sbr.rel (%p182) target = $region16
        $region15: #{tpu_custom_call.1} parent=11 // pred_region
          %s186 = ssub.s32 32, 32
          %187 = vsyncadd [#allocation8], %s186
          %190 = dma.hbm_to_smem %s0, 32, [#allocation5], [#allocation8]
        $region16: #{tpu_custom_call.1} parent=11 // pred_fallthru
          _
        // Predicated region
        $region17: #{tpu_custom_call.1} parent=11 // pred_check
          %p191 = pneg %p89
        $region18: #{tpu_custom_call.1} parent=11 // pred_check_branch
          %193 = sbr.rel (%p191) target = $region20
        $region19: #{tpu_custom_call.1} parent=11 // pred_region
          _
        $region20: #{tpu_custom_call.1} parent=11 // pred_fallthru
          _
      $region12: #{tpu_custom_call.1} parent=5 // pred_fallthru
        _
      %p194 = scmp.lt.s32.totalorder %s21, 2
      // Predicated region
      $region21: #{tpu_custom_call.1} parent=5 // pred_check
        %p195 = pneg %p194
      $region22: #{tpu_custom_call.1} parent=5 // pred_check_branch
        %197 = sbr.rel (%p195) target = $region24
      $region23: #{tpu_custom_call.1} parent=5 // pred_region
        // Predicated region
        $region25: #{tpu_custom_call.1} parent=23 // pred_check
          %p198 = pneg %p62
        $region26: #{tpu_custom_call.1} parent=23 // pred_check_branch
          %200 = sbr.rel (%p198) target = $region28
        $region27: #{tpu_custom_call.1} parent=23 // pred_region
          %s201 = sand.u32 %s52, 1
          %s202 = scalar_lea.sflag [#allocation6], %s201
          %s203 = sand.u32 %s52, 1
          %s204 = smul.addr %s203, 8
          %s205 = scalar_lea.vmem [#allocation9], %s204
          %s207 = ssub.s32 128, 128
          %208 = vsyncadd %s202, %s207
          %s209 = smul.addr %s21, 128
          %s210 = scalar_lea.hbm %s1, %s209
          %s212 = sshll.u32 %s205, 4
          %s213 = int_to_ptr.vmem [resolvable:$true] %s212
          %215 = dma.hbm_to_vmem [thread:$0]  %s210, 128, %s213, %s202
        $region28: #{tpu_custom_call.1} parent=23 // pred_fallthru
          _
        // Predicated region
        $region29: #{tpu_custom_call.1} parent=23 // pred_check
          %p216 = pneg %p109
        $region30: #{tpu_custom_call.1} parent=23 // pred_check_branch
          %218 = sbr.rel (%p216) target = $region32
        $region31: #{tpu_custom_call.1} parent=23 // pred_region
          %s219 = sand.u32 %s21, 1
          %s220 = scalar_lea.sflag [#allocation11], %s219
          %s221 = sand.u32 %s99, 1
          %s222 = smul.addr %s221, 16
          %s223 = scalar_lea.vmem [#allocation10], %s222
          %s225 = ssub.s32 256, 256
          %226 = vsyncadd %s220, %s225
          %s227 = smul.addr %s21, 2
          %s228 = smul.addr %s227, 128
          %s229 = scalar_lea.hbm %s3, %s228
          %s231 = sshll.u32 %s223, 4
          %s232 = int_to_ptr.vmem [resolvable:$true] %s231
          %234 = dma.hbm_to_vmem [thread:$0]  %s229, 256, %s232, %s220
        $region32: #{tpu_custom_call.1} parent=23 // pred_fallthru
          _
        // Predicated region
        $region33: #{tpu_custom_call.1} parent=23 // pred_check
          %p235 = pneg %p135
        $region34: #{tpu_custom_call.1} parent=23 // pred_check_branch
          %237 = sbr.rel (%p235) target = $region36
        $region35: #{tpu_custom_call.1} parent=23 // pred_region
          %s238 = sand.u32 %s21, 1
          %s239 = scalar_lea.sflag [#allocation11], %s238
          %s240 = sand.u32 %s125, 1
          %s241 = smul.addr %s240, 8
          %s242 = scalar_lea.vmem [#allocation12], %s241
          %s244 = ssub.s32 128, 128
          %245 = vsyncadd %s239, %s244
          %s246 = smul.addr %s21, 2
          %s247 = smul.addr %s246, 64
          %s248 = scalar_lea.hbm %s4, %s247
          %s250 = sshll.u32 %s242, 4
          %s251 = int_to_ptr.vmem [resolvable:$true] %s250
          %253 = dma.hbm_to_vmem [thread:$0]  %s248, 128, %s251, %s239
        $region36: #{tpu_custom_call.1} parent=23 // pred_fallthru
          _
      $region24: #{tpu_custom_call.1} parent=5 // pred_fallthru
        _
      %p254 = scmp.le.s32.totalorder 1, %s21
      %p255 = scmp.lt.s32.totalorder %s21, 3
      %p256 = pnand %p254, %p255
      %p257 = pneg %p256
      // Predicated region
      $region37: #{tpu_custom_call.1} parent=5 // pred_check
        _
      $region38: #{tpu_custom_call.1} parent=5 // pred_check_branch
        %259 = sbr.rel (%p256) target = $region40
      $region39: #{tpu_custom_call.1} parent=5 // pred_region
        %s260 = ssub.s32 %s21, 1
        // Predicated region
        $region41: #{tpu_custom_call.1} parent=39 // pred_check
          %p261 = pneg %p42
        $region42: #{tpu_custom_call.1} parent=39 // pred_check_branch
          %263 = sbr.rel (%p261) target = $region44
        $region43: #{tpu_custom_call.1} parent=39 // pred_region
          %264 = dma.done [#allocation8], 32
        $region44: #{tpu_custom_call.1} parent=39 // pred_fallthru
          _
        %s265 = sand.u32 %s55, 1
        %s266 = scalar_lea.sflag [#allocation6], %s265
        %s267 = sand.u32 %s55, 1
        %s268 = smul.addr %s267, 8
        %s269 = scalar_lea.vmem [#allocation9], %s268
        // Predicated region
        $region45: #{tpu_custom_call.1} parent=39 // pred_check
          %p270 = pneg %p68
        $region46: #{tpu_custom_call.1} parent=39 // pred_check_branch
          %272 = sbr.rel (%p270) target = $region48
        $region47: #{tpu_custom_call.1} parent=39 // pred_region
          %273 = dma.done %s266, 128
        $region48: #{tpu_custom_call.1} parent=39 // pred_fallthru
          _
        %s274 = sand.u32 %s26, 1
        %s275 = scalar_lea.sflag [#allocation11], %s274
        %s276 = sand.u32 %s102, 1
        %s277 = smul.addr %s276, 16
        %s278 = scalar_lea.vmem [#allocation10], %s277
        // Predicated region
        $region49: #{tpu_custom_call.1} parent=39 // pred_check
          %p279 = pneg %p115
        $region50: #{tpu_custom_call.1} parent=39 // pred_check_branch
          %281 = sbr.rel (%p279) target = $region52
        $region51: #{tpu_custom_call.1} parent=39 // pred_region
          %282 = dma.done %s275, 256
        $region52: #{tpu_custom_call.1} parent=39 // pred_fallthru
          _
        %s283 = sand.u32 %s26, 1
        %s284 = scalar_lea.sflag [#allocation11], %s283
        %s285 = sand.u32 %s128, 1
        %s286 = smul.addr %s285, 8
        %s287 = scalar_lea.vmem [#allocation12], %s286
        // Predicated region
        $region53: #{tpu_custom_call.1} parent=39 // pred_check
          %p288 = pneg %p141
        $region54: #{tpu_custom_call.1} parent=39 // pred_check_branch
          %290 = sbr.rel (%p288) target = $region56
        $region55: #{tpu_custom_call.1} parent=39 // pred_region
          %291 = dma.done %s284, 128
        $region56: #{tpu_custom_call.1} parent=39 // pred_fallthru
          _
        %292 = sfence
        %p293 = pneg %p42
        %p294 = pneg %p39
        %s295 = sand.u32 %s55, 1
        %s296 = scalar_lea.sflag [#allocation6], %s295
        %s297 = sand.u32 %s55, 1
        %s298 = smul.addr %s297, 8
        %s299 = scalar_lea.vmem [#allocation9], %s298
        %p300 = pneg %p68
        %p301 = pneg %p65
        %p302 = pneg %p89
        %p303 = pneg %p86
        %s304 = sand.u32 %s26, 1
        %s305 = scalar_lea.sflag [#allocation11], %s304
        %s306 = sand.u32 %s102, 1
        %s307 = smul.addr %s306, 16
        %s308 = scalar_lea.vmem [#allocation10], %s307
        %p309 = pneg %p115
        %p310 = pneg %p112
        %s311 = sand.u32 %s26, 1
        %s312 = scalar_lea.sflag [#allocation11], %s311
        %s313 = sand.u32 %s128, 1
        %s314 = smul.addr %s313, 8
        %s315 = scalar_lea.vmem [#allocation12], %s314
        %p316 = pneg %p141
        %p317 = pneg %p138
        %p318 = pneg %p167
        %p319 = pneg %p164
        %s320 = sand.u32 %s154, 1
        %s321 = scalar_lea.sflag [#allocation7], %s320
        %s322 = sand.u32 %s154, 1
        %s323 = smul.addr %s322, 8
        %s324 = scalar_lea.vmem [#allocation13], %s323
        %v325 = vld [vmem:[%s278] sm:$0xf]
        %v326 = vld [vmem:[%s278 + $0x8] sm:$0xf]
        %v327 = vmax.f32 %v325, 0.0
        %v328 = vmax.f32 %v326, 0.0
        %v329 = vand.u32 2147483647, %v325
        %v330 = vand.u32 2147483647, %v326
        %v331 = vsub.f32 0.0, %v329
        %v332 = vsub.f32 0.0, %v330
        %v333 = vmul.f32 %v331, 1.442695
        %v334 = vpow.pop %v333
        %v335 = vmul.f32 %v332, 1.442695
        %v336 = vpow.pop %v335
        %v337 = vadd.f32 %v334, 1.0
        %v338 = vadd.f32 %v336, 1.0
        %v339 = vlog2.pop %v337
        %v340 = vmul.f32 %v339, 0.6931472
        %v341 = vlog2.pop %v338
        %v342 = vmul.f32 %v341, 0.6931472
        %v343 = vadd.f32 %v327, %v340
        %v344 = vadd.f32 %v328, %v342
        %v345 = vsub.f32 %v325, %v343
        %v346 = vsub.f32 %v326, %v344
        %v347 = vmax.f32 %v345, -9.2103405
        %v348 = vmax.f32 %v346, -9.2103405
        %v349 = vmin.f32 %v347, -0.000100005
        %v350 = vmin.f32 %v348, -0.000100005
        %v351 = vsub.f32 0.0, %v343
        %v352 = vsub.f32 0.0, %v344
        %v353 = vmax.f32 %v351, -9.2103405
        %v354 = vmax.f32 %v352, -9.2103405
        %v355 = vmin.f32 %v353, -0.000100005
        %v356 = vmin.f32 %v354, -0.000100005
        %v357 = vmul.f32 %v349, 2.0
        %v358 = vmul.f32 %v350, 2.0
        %v359 = vmul.f32 %v357, 1.442695
        %v360 = vpow.pop %v359
        %v361 = vmul.f32 %v358, 1.442695
        %v362 = vpow.pop %v361
        %v363 = vmul.f32 %v355, %v360
        %v364 = vmul.f32 %v356, %v362
        %vm365 = vcmask 1043456
        %v366 = vsel %vm365, %v363, 0.0
        %v367 = vrot.slane %v366, 4
        %v368 = vadd.f32 %v366, %v367
        %v369 = vrot.slane %v368, 2
        %v370 = vadd.f32 %v368, %v369
        %v371 = vrot.slane %v370, 1
        %v372 = vadd.f32 %v370, %v371
        %v373 = vsel %vm365, %v364, 0.0
        %v374 = vrot.slane %v373, 4
        %v375 = vadd.f32 %v373, %v374
        %v376 = vrot.slane %v375, 2
        %v377 = vadd.f32 %v375, %v376
        %v378 = vrot.slane %v377, 1
        %v379 = vadd.f32 %v377, %v378
        %v382 = vcombine.low %v372, %v379
        %v384 = vunpack.c.l.s4 1966171168
        %v385 = vunpack.c.0.s8 %v384
        %v386 = vlaneseq
        %v387 = vshrl.u32 %v386, 7
        %v388 = vsub.s32 %v385, %v387
        %v389 = vrot.slane %v382, %v388
        %v391 = vunpack.c.l.s4 1966171168
        %v392 = vunpack.c.0.s8 %v391
        %v393 = vlaneseq
        %v394 = vshrl.u32 %v393, 7
        %v395 = vsub.s32 %v392, %v394
        %v396 = vrot.slane %v389, %v395
        %v398 = vlaneseq
        %vm399 = vcmp.ge.s32.totalorder %v398, 0
        %vm400 = vcmp.lt.s32.totalorder %v398, 256
        %vm401 = vmand %vm399, %vm400
        %402 = vst.msk [vmem:[#allocation2] ss:$2 sm:$0x3] %vm401, %v396
        %v403 = vld [vmem:[%s278] sm:$0xf0]
        %v404 = vld [vmem:[%s278 + $0x8] sm:$0xf0]
        %v405 = vmax.f32 %v403, 0.0
        %v406 = vmax.f32 %v404, 0.0
        %v407 = vand.u32 2147483647, %v403
        %v408 = vand.u32 2147483647, %v404
        %v409 = vsub.f32 0.0, %v407
        %v410 = vsub.f32 0.0, %v408
        %v411 = vmul.f32 %v409, 1.442695
        %v412 = vpow.pop %v411
        %v413 = vmul.f32 %v410, 1.442695
        %v414 = vpow.pop %v413
        %v415 = vadd.f32 %v412, 1.0
        %v416 = vadd.f32 %v414, 1.0
        %v417 = vlog2.pop %v415
        %v418 = vmul.f32 %v417, 0.6931472
        %v419 = vlog2.pop %v416
        %v420 = vmul.f32 %v419, 0.6931472
        %v421 = vadd.f32 %v405, %v418
        %v422 = vadd.f32 %v406, %v420
        %v423 = vsub.f32 %v403, %v421
        %v424 = vsub.f32 %v404, %v422
        %v425 = vmax.f32 %v423, -9.2103405
        %v426 = vmax.f32 %v424, -9.2103405
        %v427 = vmin.f32 %v425, -0.000100005
        %v428 = vmin.f32 %v426, -0.000100005
        %v429 = vsub.f32 0.0, %v421
        %v430 = vsub.f32 0.0, %v422
        %v431 = vmax.f32 %v429, -9.2103405
        %v432 = vmax.f32 %v430, -9.2103405
        %v433 = vmin.f32 %v431, -0.000100005
        %v434 = vmin.f32 %v432, -0.000100005
        %v435 = vmul.f32 %v427, 2.0
        %v436 = vmul.f32 %v428, 2.0
        %v437 = vmul.f32 %v435, 1.442695
        %v438 = vpow.pop %v437
        %v439 = vmul.f32 %v436, 1.442695
        %v440 = vpow.pop %v439
        %v441 = vmul.f32 %v433, %v438
        %v442 = vmul.f32 %v434, %v440
        %v445 = vrot.slane %v441, 4
        %v446 = vrot.slane %v442, 4
        %v449 = vsel %vm365, %v445, 0.0
        %v450 = vrot.slane %v449, 4
        %v451 = vadd.f32 %v449, %v450
        %v452 = vrot.slane %v451, 2
        %v453 = vadd.f32 %v451, %v452
        %v454 = vrot.slane %v453, 1
        %v455 = vadd.f32 %v453, %v454
        %v456 = vsel %vm365, %v446, 0.0
        %v457 = vrot.slane %v456, 4
        %v458 = vadd.f32 %v456, %v457
        %v459 = vrot.slane %v458, 2
        %v460 = vadd.f32 %v458, %v459
        %v461 = vrot.slane %v460, 1
        %v462 = vadd.f32 %v460, %v461
        %v465 = vcombine.low %v455, %v462
        %v467 = vunpack.c.l.s4 1966171168
        %v468 = vunpack.c.0.s8 %v467
        %v469 = vlaneseq
        %v470 = vshrl.u32 %v469, 7
        %v471 = vsub.s32 %v468, %v470
        %v472 = vrot.slane %v465, %v471
        %v474 = vunpack.c.l.s4 1966171168
        %v475 = vunpack.c.0.s8 %v474
        %v476 = vlaneseq
        %v477 = vshrl.u32 %v476, 7
        %v478 = vsub.s32 %v475, %v477
        %v479 = vrot.slane %v472, %v478
        %s481 = scalar_lea.vmem [#allocation2], 1
        %482 = vst.msk [vmem:[%s481] ss:$2 sm:$0x3] %vm401, %v479
        %483 = vst [vmem:[%s324] sm:$0xff] 0.0
        %v484 = vld [vmem:[%s2] ss:$2 sm:$0x3]
        %s485 = scalar_lea.vmem %s2, 1
        %v486 = vld [vmem:[%s485] ss:$2 sm:$0x3]
        %s487 = smul.u32 %s26, 128
        %s488 = sld [smem:[#allocation5 + %s487]]
        %s489 = sshra.s32 %s488, 2
        %s490 = sand.u32 %s488, 3
        %s491 = sshra.s32 %s488, 2
        %s492 = sand.u32 %s488, 3
        %s493 = smul.u32 %s489, 2
        %s494 = smul.u32 %s493, 4
        %s495 = sadd.s32 %s494, %s492
        %s496 = scalar_lea.vmem %s287, %s495 [#allocation12]
        %v497 = vld [vmem:[%s496] ss:$4 sm:$0x3]
        %498 = vst.msk [vmem:[#allocation3] ss:$8 sm:$0x3] %vm401, %v497
        %499 = vst.msk [vmem:[#allocation3] ss:$8 sm:$0x0] %vm401, %v497
        %s500 = sshra.s32 %s488, 3
        %s501 = sand.u32 %s488, 7
        %s502 = sshra.s32 %s488, 3
        %s503 = sand.u32 %s488, 7
        %s504 = smul.u32 %s500, 2
        %s505 = smul.u32 %s504, 8
        %s506 = sadd.s32 %s505, %s503
        %s507 = scalar_lea.vmem %s278, %s506 [#allocation10]
        %v508 = vld [vmem:[%s507] ss:$8 sm:$0x3]
        %509 = vst.msk [vmem:[#allocation4] ss:$8 sm:$0x3] %vm401, %v508
        %510 = vst.msk [vmem:[#allocation4] ss:$8 sm:$0x0] %vm401, %v508
        %s511 = sadd.s32 %s488, 4
        %s512 = sshra.s32 %s511, 3
        %s513 = sand.u32 %s511, 7
        %s514 = sshra.s32 %s511, 3
        %s515 = sand.u32 %s511, 7
        %s516 = smul.u32 %s512, 2
        %s517 = smul.u32 %s516, 8
        %s518 = sadd.s32 %s517, %s515
        %s519 = scalar_lea.vmem %s278, %s518 [#allocation10]
        %v520 = vld [vmem:[%s519] ss:$8 sm:$0x3]
        %s521 = scalar_lea.vmem [#allocation4], 16
        %522 = vst.msk [vmem:[%s521] ss:$8 sm:$0x3] %vm401, %v520
        %523 = vst.msk [vmem:[%s521] ss:$8 sm:$0x0] %vm401, %v520
        %s524 = sadd.s32 %s487, 1
        %s525 = sld [smem:[#allocation5 + %s524]]
        %s526 = sshra.s32 %s525, 2
        %s527 = sand.u32 %s525, 3
        %s528 = sshra.s32 %s525, 2
        %s529 = sand.u32 %s525, 3
        %s530 = smul.u32 %s526, 2
        %s531 = smul.u32 %s530, 4
        %s532 = sadd.s32 %s531, %s529
        %s533 = scalar_lea.vmem %s287, %s532 [#allocation12]
        %v534 = vld [vmem:[%s533] ss:$4 sm:$0x3]
        %s535 = scalar_lea.vmem [#allocation3], 1
        %536 = vst.msk [vmem:[%s535] ss:$8 sm:$0x3] %vm401, %v534
        %537 = vst.msk [vmem:[%s535] ss:$8 sm:$0x0] %vm401, %v534
        %s538 = sshra.s32 %s525, 3
        %s539 = sand.u32 %s525, 7
        %s540 = sshra.s32 %s525, 3
        %s541 = sand.u32 %s525, 7
        %s542 = smul.u32 %s538, 2
        %s543 = smul.u32 %s542, 8
        %s544 = sadd.s32 %s543, %s541
        %s545 = scalar_lea.vmem %s278, %s544 [#allocation10]
        %v546 = vld [vmem:[%s545] ss:$8 sm:$0x3]
        %s547 = scalar_lea.vmem [#allocation4], 1
        %548 = vst.msk [vmem:[%s547] ss:$8 sm:$0x3] %vm401, %v546
        %549 = vst.msk [vmem:[%s547] ss:$8 sm:$0x0] %vm401, %v546
        %s550 = sadd.s32 %s525, 4
        %s551 = sshra.s32 %s550, 3
        %s552 = sand.u32 %s550, 7
        %s553 = sshra.s32 %s550, 3
        %s554 = sand.u32 %s550, 7
        %s555 = smul.u32 %s551, 2
        %s556 = smul.u32 %s555, 8
        %s557 = sadd.s32 %s556, %s554
        %s558 = scalar_lea.vmem %s278, %s557 [#allocation10]
        %v559 = vld [vmem:[%s558] ss:$8 sm:$0x3]
        %s560 = scalar_lea.vmem [#allocation4], 17
        %561 = vst.msk [vmem:[%s560] ss:$8 sm:$0x3] %vm401, %v559
        %562 = vst.msk [vmem:[%s560] ss:$8 sm:$0x0] %vm401, %v559
        %s563 = sadd.s32 %s487, 2
        %s564 = sld [smem:[#allocation5 + %s563]]
        %s565 = sshra.s32 %s564, 2
        %s566 = sand.u32 %s564, 3
        %s567 = sshra.s32 %s564, 2
        %s568 = sand.u32 %s564, 3
        %s569 = smul.u32 %s565, 2
        %s570 = smul.u32 %s569, 4
        %s571 = sadd.s32 %s570, %s568
        %s572 = scalar_lea.vmem %s287, %s571 [#allocation12]
        %v573 = vld [vmem:[%s572] ss:$4 sm:$0x3]
        %s574 = scalar_lea.vmem [#allocation3], 2
        %575 = vst.msk [vmem:[%s574] ss:$8 sm:$0x3] %vm401, %v573
        %576 = vst.msk [vmem:[%s574] ss:$8 sm:$0x0] %vm401, %v573
        %s577 = sshra.s32 %s564, 3
        %s578 = sand.u32 %s564, 7
        %s579 = sshra.s32 %s564, 3
        %s580 = sand.u32 %s564, 7
        %s581 = smul.u32 %s577, 2
        %s582 = smul.u32 %s581, 8
        %s583 = sadd.s32 %s582, %s580
        %s584 = scalar_lea.vmem %s278, %s583 [#allocation10]
        %v585 = vld [vmem:[%s584] ss:$8 sm:$0x3]
        %s586 = scalar_lea.vmem [#allocation4], 2
        %587 = vst.msk [vmem:[%s586] ss:$8 sm:$0x3] %vm401, %v585
        %588 = vst.msk [vmem:[%s586] ss:$8 sm:$0x0] %vm401, %v585
        %s589 = sadd.s32 %s564, 4
        %s590 = sshra.s32 %s589, 3
        %s591 = sand.u32 %s589, 7
        %s592 = sshra.s32 %s589, 3
        %s593 = sand.u32 %s589, 7
        %s594 = smul.u32 %s590, 2
        %s595 = smul.u32 %s594, 8
        %s596 = sadd.s32 %s595, %s593
        %s597 = scalar_lea.vmem %s278, %s596 [#allocation10]
        %v598 = vld [vmem:[%s597] ss:$8 sm:$0x3]
        %s599 = scalar_lea.vmem [#allocation4], 18
        %600 = vst.msk [vmem:[%s599] ss:$8 sm:$0x3] %vm401, %v598
        %601 = vst.msk [vmem:[%s599] ss:$8 sm:$0x0] %vm401, %v598
        %s602 = sadd.s32 %s487, 3
        %s603 = sld [smem:[#allocation5 + %s602]]
        %s604 = sshra.s32 %s603, 2
        %s605 = sand.u32 %s603, 3
        %s606 = sshra.s32 %s603, 2
        %s607 = sand.u32 %s603, 3
        %s608 = smul.u32 %s604, 2
        %s609 = smul.u32 %s608, 4
        %s610 = sadd.s32 %s609, %s607
        %s611 = scalar_lea.vmem %s287, %s610 [#allocation12]
        %v612 = vld [vmem:[%s611] ss:$4 sm:$0x3]
        %s613 = scalar_lea.vmem [#allocation3], 3
        %614 = vst.msk [vmem:[%s613] ss:$8 sm:$0x3] %vm401, %v612
        %615 = vst.msk [vmem:[%s613] ss:$8 sm:$0x0] %vm401, %v612
        %s616 = sshra.s32 %s603, 3
        %s617 = sand.u32 %s603, 7
        %s618 = sshra.s32 %s603, 3
        %s619 = sand.u32 %s603, 7
        %s620 = smul.u32 %s616, 2
        %s621 = smul.u32 %s620, 8
        %s622 = sadd.s32 %s621, %s619
        %s623 = scalar_lea.vmem %s278, %s622 [#allocation10]
        %v624 = vld [vmem:[%s623] ss:$8 sm:$0x3]
        %s625 = scalar_lea.vmem [#allocation4], 3
        %626 = vst.msk [vmem:[%s625] ss:$8 sm:$0x3] %vm401, %v624
        %627 = vst.msk [vmem:[%s625] ss:$8 sm:$0x0] %vm401, %v624
        %s628 = sadd.s32 %s603, 4
        %s629 = sshra.s32 %s628, 3
        %s630 = sand.u32 %s628, 7
        %s631 = sshra.s32 %s628, 3
        %s632 = sand.u32 %s628, 7
        %s633 = smul.u32 %s629, 2
        %s634 = smul.u32 %s633, 8
        %s635 = sadd.s32 %s634, %s632
        %s636 = scalar_lea.vmem %s278, %s635 [#allocation10]
        %v637 = vld [vmem:[%s636] ss:$8 sm:$0x3]
        %s638 = scalar_lea.vmem [#allocation4], 19
        %639 = vst.msk [vmem:[%s638] ss:$8 sm:$0x3] %vm401, %v637
        %640 = vst.msk [vmem:[%s638] ss:$8 sm:$0x0] %vm401, %v637
        %s641 = sadd.s32 %s487, 4
        %s642 = sld [smem:[#allocation5 + %s641]]
        %s643 = sshra.s32 %s642, 2
        %s644 = sand.u32 %s642, 3
        %s645 = sshra.s32 %s642, 2
        %s646 = sand.u32 %s642, 3
        %s647 = smul.u32 %s643, 2
        %s648 = smul.u32 %s647, 4
        %s649 = sadd.s32 %s648, %s646
        %s650 = scalar_lea.vmem %s287, %s649 [#allocation12]
        %v651 = vld [vmem:[%s650] ss:$4 sm:$0x3]
        %s652 = scalar_lea.vmem [#allocation3], 4
        %653 = vst.msk [vmem:[%s652] ss:$8 sm:$0x3] %vm401, %v651
        %654 = vst.msk [vmem:[%s652] ss:$8 sm:$0x0] %vm401, %v651
        %s655 = sshra.s32 %s642, 3
        %s656 = sand.u32 %s642, 7
        %s657 = sshra.s32 %s642, 3
        %s658 = sand.u32 %s642, 7
        %s659 = smul.u32 %s655, 2
        %s660 = smul.u32 %s659, 8
        %s661 = sadd.s32 %s660, %s658
        %s662 = scalar_lea.vmem %s278, %s661 [#allocation10]
        %v663 = vld [vmem:[%s662] ss:$8 sm:$0x3]
        %s664 = scalar_lea.vmem [#allocation4], 4
        %665 = vst.msk [vmem:[%s664] ss:$8 sm:$0x3] %vm401, %v663
        %666 = vst.msk [vmem:[%s664] ss:$8 sm:$0x0] %vm401, %v663
        %s667 = sadd.s32 %s642, 4
        %s668 = sshra.s32 %s667, 3
        %s669 = sand.u32 %s667, 7
        %s670 = sshra.s32 %s667, 3
        %s671 = sand.u32 %s667, 7
        %s672 = smul.u32 %s668, 2
        %s673 = smul.u32 %s672, 8
        %s674 = sadd.s32 %s673, %s671
        %s675 = scalar_lea.vmem %s278, %s674 [#allocation10]
        %v676 = vld [vmem:[%s675] ss:$8 sm:$0x3]
        %s677 = scalar_lea.vmem [#allocation4], 20
        %678 = vst.msk [vmem:[%s677] ss:$8 sm:$0x3] %vm401, %v676
        %679 = vst.msk [vmem:[%s677] ss:$8 sm:$0x0] %vm401, %v676
        %s680 = sadd.s32 %s487, 5
        %s681 = sld [smem:[#allocation5 + %s680]]
        %s682 = sshra.s32 %s681, 2
        %s683 = sand.u32 %s681, 3
        %s684 = sshra.s32 %s681, 2
        %s685 = sand.u32 %s681, 3
        %s686 = smul.u32 %s682, 2
        %s687 = smul.u32 %s686, 4
        %s688 = sadd.s32 %s687, %s685
        %s689 = scalar_lea.vmem %s287, %s688 [#allocation12]
        %v690 = vld [vmem:[%s689] ss:$4 sm:$0x3]
        %s691 = scalar_lea.vmem [#allocation3], 5
        %692 = vst.msk [vmem:[%s691] ss:$8 sm:$0x3] %vm401, %v690
        %693 = vst.msk [vmem:[%s691] ss:$8 sm:$0x0] %vm401, %v690
        %s694 = sshra.s32 %s681, 3
        %s695 = sand.u32 %s681, 7
        %s696 = sshra.s32 %s681, 3
        %s697 = sand.u32 %s681, 7
        %s698 = smul.u32 %s694, 2
        %s699 = smul.u32 %s698, 8
        %s700 = sadd.s32 %s699, %s697
        %s701 = scalar_lea.vmem %s278, %s700 [#allocation10]
        %v702 = vld [vmem:[%s701] ss:$8 sm:$0x3]
        %s703 = scalar_lea.vmem [#allocation4], 5
        %704 = vst.msk [vmem:[%s703] ss:$8 sm:$0x3] %vm401, %v702
        %705 = vst.msk [vmem:[%s703] ss:$8 sm:$0x0] %vm401, %v702
        %s706 = sadd.s32 %s681, 4
        %s707 = sshra.s32 %s706, 3
        %s708 = sand.u32 %s706, 7
        %s709 = sshra.s32 %s706, 3
        %s710 = sand.u32 %s706, 7
        %s711 = smul.u32 %s707, 2
        %s712 = smul.u32 %s711, 8
        %s713 = sadd.s32 %s712, %s710
        %s714 = scalar_lea.vmem %s278, %s713 [#allocation10]
        %v715 = vld [vmem:[%s714] ss:$8 sm:$0x3]
        %s716 = scalar_lea.vmem [#allocation4], 21
        %717 = vst.msk [vmem:[%s716] ss:$8 sm:$0x3] %vm401, %v715
        %718 = vst.msk [vmem:[%s716] ss:$8 sm:$0x0] %vm401, %v715
        %s719 = sadd.s32 %s487, 6
        %s720 = sld [smem:[#allocation5 + %s719]]
        %s721 = sshra.s32 %s720, 2
        %s722 = sand.u32 %s720, 3
        %s723 = sshra.s32 %s720, 2
        %s724 = sand.u32 %s720, 3
        %s725 = smul.u32 %s721, 2
        %s726 = smul.u32 %s725, 4
        %s727 = sadd.s32 %s726, %s724
        %s728 = scalar_lea.vmem %s287, %s727 [#allocation12]
        %v729 = vld [vmem:[%s728] ss:$4 sm:$0x3]
        %s730 = scalar_lea.vmem [#allocation3], 6
        %731 = vst.msk [vmem:[%s730] ss:$8 sm:$0x3] %vm401, %v729
        %732 = vst.msk [vmem:[%s730] ss:$8 sm:$0x0] %vm401, %v729
        %s733 = sshra.s32 %s720, 3
        %s734 = sand.u32 %s720, 7
        %s735 = sshra.s32 %s720, 3
        %s736 = sand.u32 %s720, 7
        %s737 = smul.u32 %s733, 2
        %s738 = smul.u32 %s737, 8
        %s739 = sadd.s32 %s738, %s736
        %s740 = scalar_lea.vmem %s278, %s739 [#allocation10]
        %v741 = vld [vmem:[%s740] ss:$8 sm:$0x3]
        %s742 = scalar_lea.vmem [#allocation4], 6
        %743 = vst.msk [vmem:[%s742] ss:$8 sm:$0x3] %vm401, %v741
        %744 = vst.msk [vmem:[%s742] ss:$8 sm:$0x0] %vm401, %v741
        %s745 = sadd.s32 %s720, 4
        %s746 = sshra.s32 %s745, 3
        %s747 = sand.u32 %s745, 7
        %s748 = sshra.s32 %s745, 3
        %s749 = sand.u32 %s745, 7
        %s750 = smul.u32 %s746, 2
        %s751 = smul.u32 %s750, 8
        %s752 = sadd.s32 %s751, %s749
        %s753 = scalar_lea.vmem %s278, %s752 [#allocation10]
        %v754 = vld [vmem:[%s753] ss:$8 sm:$0x3]
        %s755 = scalar_lea.vmem [#allocation4], 22
        %756 = vst.msk [vmem:[%s755] ss:$8 sm:$0x3] %vm401, %v754
        %757 = vst.msk [vmem:[%s755] ss:$8 sm:$0x0] %vm401, %v754
        %s758 = sadd.s32 %s487, 7
        %s759 = sld [smem:[#allocation5 + %s758]]
        %s760 = sshra.s32 %s759, 2
        %s761 = sand.u32 %s759, 3
        %s762 = sshra.s32 %s759, 2
        %s763 = sand.u32 %s759, 3
        %s764 = smul.u32 %s760, 2
        %s765 = smul.u32 %s764, 4
        %s766 = sadd.s32 %s765, %s763
        %s767 = scalar_lea.vmem %s287, %s766 [#allocation12]
        %v768 = vld [vmem:[%s767] ss:$4 sm:$0x3]
        %s769 = scalar_lea.vmem [#allocation3], 7
        %770 = vst.msk [vmem:[%s769] ss:$8 sm:$0x3] %vm401, %v768
        %771 = vst.msk [vmem:[%s769] ss:$8 sm:$0x0] %vm401, %v768
        %s772 = sshra.s32 %s759, 3
        %s773 = sand.u32 %s759, 7
        %s774 = sshra.s32 %s759, 3
        %s775 = sand.u32 %s759, 7
        %s776 = smul.u32 %s772, 2
        %s777 = smul.u32 %s776, 8
        %s778 = sadd.s32 %s777, %s775
        %s779 = scalar_lea.vmem %s278, %s778 [#allocation10]
        %v780 = vld [vmem:[%s779] ss:$8 sm:$0x3]
        %s781 = scalar_lea.vmem [#allocation4], 7
        %782 = vst.msk [vmem:[%s781] ss:$8 sm:$0x3] %vm401, %v780
        %783 = vst.msk [vmem:[%s781] ss:$8 sm:$0x0] %vm401, %v780
        %s784 = sadd.s32 %s759, 4
        %s785 = sshra.s32 %s784, 3
        %s786 = sand.u32 %s784, 7
        %s787 = sshra.s32 %s784, 3
        %s788 = sand.u32 %s784, 7
        %s789 = smul.u32 %s785, 2
        %s790 = smul.u32 %s789, 8
        %s791 = sadd.s32 %s790, %s788
        %s792 = scalar_lea.vmem %s278, %s791 [#allocation10]
        %v793 = vld [vmem:[%s792] ss:$8 sm:$0x3]
        %s794 = scalar_lea.vmem [#allocation4], 23
        %795 = vst.msk [vmem:[%s794] ss:$8 sm:$0x3] %vm401, %v793
        %796 = vst.msk [vmem:[%s794] ss:$8 sm:$0x0] %vm401, %v793
        %v797 = vld [vmem:[%s269] sm:$0xff]
        %v799 = vlaneseq
        %v800 = vshrl.u32 %v799, 7
        %v801 = vsub.s32 0, %v800
        %v802 = vrot.slane %v484, %v801
        %v803 = vlaneseq
        %v804 = vshrl.u32 %v803, 7
        %v805 = vsub.s32 1, %v804
        %v806 = vrot.slane %v484, %v805
        %810 = vset.pattern.permute.xlu0 0
        %811 = vperm.xlu0 %810, %v797
        %v812 = vpop.permute.xlu0 %811
        %vm814 = vcmp.ge.f32.partialorder %v802, %v812
        %vm815 = vcmp.ge.f32.partialorder %v806, %v812
        %816 = vset.pattern.permute.xlu0 1
        %817 = vperm.xlu0 %816, %v797
        %v818 = vpop.permute.xlu0 %817
        %vm820 = vcmp.lt.f32.partialorder %v802, %v818
        %vm821 = vcmp.lt.f32.partialorder %v806, %v818
        %vm822 = vmand %vm814, %vm820
        %vm823 = vmand %vm815, %vm821
        %v825 = vlaneseq
        %v826 = vshrl.u32 %v825, 7
        %v827 = vsub.s32 0, %v826
        %v828 = vrot.slane %v486, %v827
        %v829 = vlaneseq
        %v830 = vshrl.u32 %v829, 7
        %v831 = vsub.s32 1, %v830
        %v832 = vrot.slane %v486, %v831
        %835 = vset.pattern.permute.xlu0 2
        %836 = vperm.xlu0 %835, %v797
        %v837 = vpop.permute.xlu0 %836
        %vm839 = vcmp.ge.f32.partialorder %v828, %v837
        %vm840 = vcmp.ge.f32.partialorder %v832, %v837
        %vm841 = vmand %vm822, %vm839
        %vm842 = vmand %vm823, %vm840
        %843 = vset.pattern.permute.xlu0 3
        %844 = vperm.xlu0 %843, %v797
        %v845 = vpop.permute.xlu0 %844
        %vm847 = vcmp.lt.f32.partialorder %v828, %v845
        %vm848 = vcmp.lt.f32.partialorder %v832, %v845
        %vm849 = vmand %vm841, %vm847
        %vm850 = vmand %vm842, %vm848
        %v851 = vsel %vm849, 1, 0
        %v852 = vsel %vm850, 1, 0
        %v853 = vcvt.s32.f32 %v851
        %v854 = vcvt.s32.f32 %v852
        %v855 = vld [vmem:[#allocation3] sm:$0xff]
        %v856 = vld [vmem:[#allocation3 + $0x8] sm:$0xff]
        %vm857 = vcmp.eq.f32.partialorder %v855, 1.0
        %vm858 = vcmp.eq.f32.partialorder %v856, 1.0
        %v859 = vsel %vm857, 1, 0
        %v860 = vsel %vm858, 1, 0
        %v861 = vcvt.s32.f32 %v859
        %v862 = vcvt.s32.f32 %v860
        %v863 = vmul.f32 %v861, %v853
        %v864 = vmul.f32 %v862, %v854
        %vm865 = vcmp.lt.f32.partialorder %v855, 1.0
        %vm866 = vcmp.lt.f32.partialorder %v856, 1.0
        %v867 = vsel %vm865, 1, 0
        %v868 = vsel %vm866, 1, 0
        %v869 = vcvt.s32.f32 %v867
        %v870 = vcvt.s32.f32 %v868
        %v871 = vmul.f32 %v869, %v853
        %v872 = vmul.f32 %v870, %v854
        %v873 = vsub.f32 1.0, %v855
        %v874 = vsub.f32 1.0, %v856
        %v875 = vmul.f32 %v873, %v873
        %v876 = vmul.f32 %v874, %v874
        %v877 = vmul.f32 %v875, %v875
        %v878 = vmul.f32 %v876, %v876
        %v879 = vadd.f32 %v863, %v864
        %880 = vadd.xlane.f32.xlu0 %v879
        %v881 = vpop.xlane.xlu0 %880
        %v882 = vld [vmem:[#allocation4] sm:$0xff]
        %v883 = vld [vmem:[#allocation4 + $0x8] sm:$0xff]
        %v884 = vmax.f32 %v882, 0.0
        %v885 = vmax.f32 %v883, 0.0
        %v886 = vand.u32 2147483647, %v882
        %v887 = vand.u32 2147483647, %v883
        %v888 = vsub.f32 0.0, %v886
        %v889 = vsub.f32 0.0, %v887
        %v890 = vmul.f32 %v888, 1.442695
        %v891 = vpow.pop %v890
        %v892 = vmul.f32 %v889, 1.442695
        %v893 = vpow.pop %v892
        %v894 = vadd.f32 %v891, 1.0
        %v895 = vadd.f32 %v893, 1.0
        %v896 = vlog2.pop %v894
        %v897 = vmul.f32 %v896, 0.6931472
        %v898 = vlog2.pop %v895
        %v899 = vmul.f32 %v898, 0.6931472
        %v900 = vadd.f32 %v884, %v897
        %v901 = vadd.f32 %v885, %v899
        %v902 = vsub.f32 %v882, %v900
        %v903 = vsub.f32 %v883, %v901
        %v904 = vmax.f32 %v902, -9.2103405
        %v905 = vmax.f32 %v903, -9.2103405
        %v906 = vmin.f32 %v904, -0.000100005
        %v907 = vmin.f32 %v905, -0.000100005
        %v908 = vsub.f32 0.0, %v900
        %v909 = vsub.f32 0.0, %v901
        %v910 = vmax.f32 %v908, -9.2103405
        %v911 = vmax.f32 %v909, -9.2103405
        %v912 = vmin.f32 %v910, -0.000100005
        %v913 = vmin.f32 %v911, -0.000100005
        %v914 = vmul.f32 %v906, 2.0
        %v915 = vmul.f32 %v907, 2.0
        %v916 = vmul.f32 %v914, 1.442695
        %v917 = vpow.pop %v916
        %v918 = vmul.f32 %v915, 1.442695
        %v919 = vpow.pop %v918
        %v920 = vmul.f32 %v912, 2.0
        %v921 = vmul.f32 %v913, 2.0
        %v922 = vmul.f32 %v920, 1.442695
        %v923 = vpow.pop %v922
        %v924 = vmul.f32 %v921, 1.442695
        %v925 = vpow.pop %v924
        %v926 = vmul.f32 %v906, %v923
        %v927 = vmul.f32 %v907, %v925
        %v928 = vmul.f32 %v912, %v917
        %v929 = vmul.f32 %v913, %v919
        %v930 = vld [vmem:[#allocation2] ss:$2 sm:$0x3]
        %v931 = vmul.f32 %v926, %v863
        %v932 = vmul.f32 %v927, %v864
        %v933 = vadd.f32 %v931, %v932
        %934 = vadd.xlane.f32.xlu0 %v933
        %v935 = vpop.xlane.xlu0 %934
        %v936 = vmul.f32 %v877, %v871
        %v937 = vmul.f32 %v878, %v872
        %v938 = vmul.f32 %v928, %v936
        %v939 = vmul.f32 %v929, %v937
        %v941 = vlaneseq
        %v942 = vshrl.u32 %v941, 7
        %v943 = vsub.s32 0, %v942
        %v944 = vrot.slane %v930, %v943
        %v945 = vlaneseq
        %v946 = vshrl.u32 %v945, 7
        %v947 = vsub.s32 1, %v946
        %v948 = vrot.slane %v930, %v947
        %v951 = vsub.f32 %v944, %v928
        %v952 = vsub.f32 %v948, %v929
        %v953 = vmul.f32 %v853, %v951
        %v954 = vmul.f32 %v854, %v952
        %v955 = vadd.f32 %v938, %v953
        %v956 = vadd.f32 %v939, %v954
        %v957 = vadd.f32 %v955, %v956
        %958 = vadd.xlane.f32.xlu0 %v957
        %v959 = vpop.xlane.xlu0 %958
        %vm960 = vcmp.eq.f32.partialorder %v881, 0.0
        %v961 = vsub.f32 0.0, %v959
        %v962 = vadd.f32 %v935, %v959
        %v963 = vsub.f32 0.0, %v962
        %v964 = vmax.f32 %v881, 1.0
        %v965 = vrcp.pop %v964
        %v966 = vmul.f32 %v963, %v965
        %v967 = vsel %vm960, %v961, %v966
        %vm968 = vcmask 7168
        %969 = vst.msk [vmem:[%s324] sm:$0xff] %vm968, %v967
        %v970 = vld [vmem:[#allocation4 + $0x10] sm:$0xff]
        %v971 = vld [vmem:[#allocation4 + $0x18] sm:$0xff]
        %v972 = vmax.f32 %v970, 0.0
        %v973 = vmax.f32 %v971, 0.0
        %v974 = vand.u32 2147483647, %v970
        %v975 = vand.u32 2147483647, %v971
        %v976 = vsub.f32 0.0, %v974
        %v977 = vsub.f32 0.0, %v975
        %v978 = vmul.f32 %v976, 1.442695
        %v979 = vpow.pop %v978
        %v980 = vmul.f32 %v977, 1.442695
        %v981 = vpow.pop %v980
        %v982 = vadd.f32 %v979, 1.0
        %v983 = vadd.f32 %v981, 1.0
        %v984 = vlog2.pop %v982
        %v985 = vmul.f32 %v984, 0.6931472
        %v986 = vlog2.pop %v983
        %v987 = vmul.f32 %v986, 0.6931472
        %v988 = vadd.f32 %v972, %v985
        %v989 = vadd.f32 %v973, %v987
        %v990 = vsub.f32 %v970, %v988
        %v991 = vsub.f32 %v971, %v989
        %v992 = vmax.f32 %v990, -9.2103405
        %v993 = vmax.f32 %v991, -9.2103405
        %v994 = vmin.f32 %v992, -0.000100005
        %v995 = vmin.f32 %v993, -0.000100005
        %v996 = vsub.f32 0.0, %v988
        %v997 = vsub.f32 0.0, %v989
        %v998 = vmax.f32 %v996, -9.2103405
        %v999 = vmax.f32 %v997, -9.2103405
        %v1000 = vmin.f32 %v998, -0.000100005
        %v1001 = vmin.f32 %v999, -0.000100005
        %v1002 = vmul.f32 %v994, 2.0
        %v1003 = vmul.f32 %v995, 2.0
        %v1004 = vmul.f32 %v1002, 1.442695
        %v1005 = vpow.pop %v1004
        %v1006 = vmul.f32 %v1003, 1.442695
        %v1007 = vpow.pop %v1006
        %v1008 = vmul.f32 %v1000, 2.0
        %v1009 = vmul.f32 %v1001, 2.0
        %v1010 = vmul.f32 %v1008, 1.442695
        %v1011 = vpow.pop %v1010
        %v1012 = vmul.f32 %v1009, 1.442695
        %v1013 = vpow.pop %v1012
        %v1014 = vmul.f32 %v994, %v1011
        %v1015 = vmul.f32 %v995, %v1013
        %v1016 = vmul.f32 %v1000, %v1005
        %v1017 = vmul.f32 %v1001, %v1007
        %v1018 = vld [vmem:[%s481] ss:$2 sm:$0x3]
        %v1019 = vmul.f32 %v1014, %v863
        %v1020 = vmul.f32 %v1015, %v864
        %v1021 = vadd.f32 %v1019, %v1020
        %1022 = vadd.xlane.f32.xlu0 %v1021
        %v1023 = vpop.xlane.xlu0 %1022
        %v1024 = vmul.f32 %v1016, %v936
        %v1025 = vmul.f32 %v1017, %v937
        %v1027 = vlaneseq
        %v1028 = vshrl.u32 %v1027, 7
        %v1029 = vsub.s32 0, %v1028
        %v1030 = vrot.slane %v1018, %v1029
        %v1031 = vlaneseq
        %v1032 = vshrl.u32 %v1031, 7
        %v1033 = vsub.s32 1, %v1032
        %v1034 = vrot.slane %v1018, %v1033
        %v1037 = vsub.f32 %v1030, %v1016
        %v1038 = vsub.f32 %v1034, %v1017
        %v1039 = vmul.f32 %v853, %v1037
        %v1040 = vmul.f32 %v854, %v1038
        %v1041 = vadd.f32 %v1024, %v1039
        %v1042 = vadd.f32 %v1025, %v1040
        %v1043 = vadd.f32 %v1041, %v1042
        %1044 = vadd.xlane.f32.xlu0 %v1043
        %v1045 = vpop.xlane.xlu0 %1044
        %v1046 = vsub.f32 0.0, %v1045
        %v1047 = vadd.f32 %v1023, %v1045
        %v1048 = vsub.f32 0.0, %v1047
        %v1049 = vmul.f32 %v1048, %v965
        %v1050 = vsel %vm960, %v1046, %v1049
        %vm1051 = vcmask 15368
        %1052 = vst.msk [vmem:[%s324] sm:$0xff] %vm1051, %v1050
        %s1053 = sand.u32 %s154, 1
        %s1054 = scalar_lea.sflag [#allocation7], %s1053
        %s1055 = sand.u32 %s154, 1
        %s1056 = smul.addr %s1055, 8
        %s1057 = scalar_lea.vmem [#allocation13], %s1056
        // Predicated region
        $region57: #{tpu_custom_call.1} parent=39 // pred_check
          %p1058 = pneg %p164
        $region58: #{tpu_custom_call.1} parent=39 // pred_check_branch
          %1060 = sbr.rel (%p1058) target = $region60
        $region59: #{tpu_custom_call.1} parent=39 // pred_region
          %s1062 = ssub.s32 128, 128
          %1063 = vsyncadd %s1054, %s1062
          %s1064 = smul.addr %s26, 128
          %s1065 = scalar_lea.hbm %s5, %s1064
          %s1067 = sshll.u32 %s1057, 4
          %s1068 = int_to_ptr.vmem [resolvable:$true] %s1067
          %1070 = dma.vmem_to_hbm [thread:$0]  %s1068, 128, %s1065, %s1054
        $region60: #{tpu_custom_call.1} parent=39 // pred_fallthru
          _
      $region40: #{tpu_custom_call.1} parent=5 // pred_fallthru
        _
      %p1071 = scmp.le.s32.totalorder 2, %s21
      // Predicated region
      $region61: #{tpu_custom_call.1} parent=5 // pred_check
        %p1072 = pneg %p1071
      $region62: #{tpu_custom_call.1} parent=5 // pred_check_branch
        %1074 = sbr.rel (%p1072) target = $region64
      $region63: #{tpu_custom_call.1} parent=5 // pred_region
        %s1075 = ssub.s32 %s21, 2
        // Predicated region
        $region65: #{tpu_custom_call.1} parent=63 // pred_check
          %p1076 = pneg %p170
        $region66: #{tpu_custom_call.1} parent=63 // pred_check_branch
          %1078 = sbr.rel (%p1076) target = $region68
        $region67: #{tpu_custom_call.1} parent=63 // pred_region
          %s1079 = sand.u32 %s155, 1
          %s1080 = scalar_lea.sflag [#allocation7], %s1079
          %s1081 = sand.u32 %s155, 1
          %s1082 = smul.addr %s1081, 8
          %s1083 = scalar_lea.vmem [#allocation13], %s1082
          %1084 = dma.done %s1080, 128
        $region68: #{tpu_custom_call.1} parent=63 // pred_fallthru
          _
      $region64: #{tpu_custom_call.1} parent=5 // pred_fallthru
        _
    $region6: #{tpu_custom_call.1} parent=1 // loop_footer
      %s25 = sadd.s32 1, %s21
    $region7: #{tpu_custom_call.1} parent=1 // loop_footer_branch
      %20 = sbr.rel target = $region3
    $region8: #{tpu_custom_call.1} parent=1 // loop_exit
      _
    %1085 = vsyncpa [#allocation6], 1
    %s1086 = scalar_lea.sflag [#allocation6], 1
    %1087 = vsyncpa %s1086, 1
    %1088 = vsyncpa [#allocation11], 1
    %s1089 = scalar_lea.sflag [#allocation11], 1
    %1090 = vsyncpa %s1089, 1
    %1091 = vsyncpa [#allocation7], 1
    %s1092 = scalar_lea.sflag [#allocation7], 1
    %1093 = vsyncpa %s1092, 1
    %1094 = vsyncpa [#allocation8], 1
    %s1095 = scalar_lea.sflag [#allocation8], 1
    %1096 = vsyncpa %s1095, 1

</llo_original>
